<compile_context>
chip_gen: v7x
topology: tpu7x:2x2x1
jax: 0.10.0
libtpu: 0.0.40
codegen_flags: <defaults>
</compile_context>

<pallas_src>
import jax
import jax.numpy as jnp
from jax.experimental import pallas as pl
from jax.experimental.pallas import tpu as pltpu


def add_conv1x1_kernel(a_ref, b_ref, w_ref, o_ref):
    # f32 add on the VPU (v5e has no bf16 VPU path), bf16 operands into the
    # MXU, f32 accumulation via preferred_element_type.
    x = (a_ref[...] + b_ref[...]).astype(jnp.bfloat16)        # [Cin, M]
    # [tn, Cin] @ [Cin, M] -> [tn, M]; result is already channel-major (NCHW)
    # so the wrapper needs zero transposes.
    o_ref[...] = jnp.dot(w_ref[...], x, preferred_element_type=jnp.float32)


def add_conv1x1_nchw(a_2d, b_2d, w_bf16, *, tn=1152):
    """a_2d, b_2d: [Cin, M] f32 (channel-major NCHW view);
    w_bf16: [Cout, Cin] bf16.  Returns [Cout, M] f32 = w @ (a + b)."""
    Cin, M = a_2d.shape
    Cout, Cin2 = w_bf16.shape
    assert Cin == Cin2
    assert Cin % 128 == 0, Cin  # contraction dim must be lane-tile aligned
    if Cout % tn != 0:
        # Single-block fallback: correct, but disables the v7x 2-TC split and
        # all DMA/compute overlap — revisit tn if Cout changes.
        tn = Cout
    n_blocks = Cout // tn

    cost = pl.CostEstimate(
        flops=2 * M * Cin * Cout,
        transcendentals=0,
        bytes_accessed=(a_2d.size + b_2d.size) * 4
        + w_bf16.size * 2
        + Cout * M * 4,
    )

    return pl.pallas_call(
        add_conv1x1_kernel,
        out_shape=jax.ShapeDtypeStruct((Cout, M), jnp.float32),
        grid_spec=pltpu.PrefetchScalarGridSpec(
            num_scalar_prefetch=0,
            grid=(n_blocks,),
            in_specs=[
                # a/b: constant block index -> stay resident across the grid
                # (full-extent lane dim 49 is legal even though it's not a
                # multiple of 128).
                pl.BlockSpec((Cin, M), lambda j: (0, 0)),
                pl.BlockSpec((Cin, M), lambda j: (0, 0)),
                # weight: tiled along Cout so chunk j+1 DMAs under compute j;
                # even block count balances the weight DMA across v7x's 2 TCs.
                pl.BlockSpec((tn, Cin), lambda j: (j, 0)),
            ],
            out_specs=pl.BlockSpec((tn, M), lambda j: (j, 0)),
        ),
        compiler_params=pltpu.CompilerParams(
            dimension_semantics=("parallel",),  # v7x: split Cout over 2 TCs
        ),
        cost_estimate=cost,
    )(a_2d, b_2d, w_bf16)


def prepare_conv_weight(weight):
    """One-time weight packing: [Cout, Cin, 1, 1] f32 -> [Cout, Cin] bf16.

    Original layout is kept (no transpose); call once at parameter-load time.
    """
    c_out, c_in = weight.shape[0], weight.shape[1]
    return weight.reshape(c_out, c_in).astype(jnp.bfloat16)


def module_forward(x666, x651, w_packed):
    """Reproduces M.forward with zero layout-plumbing HLOs.

    x666, x651: [1, C_in, H, W] f32 (NCHW)
    w_packed:   [C_out, C_in]   bf16 (from prepare_conv_weight)
    returns:    [1, C_out, H, W] f32
    """
    N, C_in, H, W = x666.shape
    C_out = w_packed.shape[0]
    assert N == 1  # TODO(synk): N>1 needs a leading batch grid axis
    a = x666.reshape(C_in, H * W)  # free view of contiguous NCHW
    b = x651.reshape(C_in, H * W)
    out = add_conv1x1_nchw(a, b, w_packed)  # [C_out, H*W] f32
    return out.reshape(N, C_out, H, W)      # free view back to NCHW


if __name__ == "__main__":
    key = jax.random.PRNGKey(0)
    k1, k2, k3 = jax.random.split(key, 3)

    N, C_in, H, W = 1, 384, 7, 7
    C_out = 2304

    x666 = jax.random.normal(k1, (N, C_in, H, W), dtype=jnp.float32)
    x651 = jax.random.normal(k2, (N, C_in, H, W), dtype=jnp.float32)
    weight = (
        jax.random.normal(k3, (C_out, C_in, 1, 1), dtype=jnp.float32)
        * (1.0 / jnp.sqrt(C_in))
    )

    # One-time weight packing (hoisted out of the per-call path).
    w_packed = jax.block_until_ready(prepare_conv_weight(weight))

    fwd = jax.jit(module_forward)
    out = jax.block_until_ready(fwd(x666, x651, w_packed))
    assert out.shape == (N, C_out, H, W), out.shape

    # Tight check against a reference using the same bf16-operand / f32
    # accumulate math (validates the kernel itself).
    x667 = (x666 + x651).reshape(C_in, H * W)
    ref_bf16 = jnp.dot(
        w_packed, x667.astype(jnp.bfloat16), preferred_element_type=jnp.float32
    ).reshape(N, C_out, H, W)
    assert jnp.allclose(out, ref_bf16, atol=1e-3, rtol=1e-3)

    # Loose check against exact f32 PyTorch Conv2d semantics (bf16
    # quantization of activations/weights bounds the deviation).
    ref_f32 = jnp.einsum(
        "nchw,oc->nohw", x666 + x651, weight.reshape(C_out, C_in)
    )
    assert jnp.allclose(out, ref_f32, atol=5e-2, rtol=5e-2)

    print("KERNEL_OK")
</pallas_src>

<mosaic_0001>
module attributes {stable_mosaic.version = 11 : i64} {
  func.func @add_conv1x1_kernel(%arg0: i32, %arg1: memref<384x49xf32, #tpu.memory_space<vmem>>, %arg2: memref<384x49xf32, #tpu.memory_space<vmem>>, %arg3: memref<1152x384xbf16, #tpu.memory_space<vmem>>, %arg4: memref<1152x49xf32, #tpu.memory_space<vmem>>) attributes {dimension_semantics = [#tpu.dimension_semantics<parallel>], iteration_bounds = array<i64: 2>, scalar_prefetch = 0 : i64, scratch_operands = 0 : i64, tpu.core_type = #tpu.core_type<tc>, window_params = [{pipeline_mode = #tpu.pipeline_mode<synchronous>, transform_indices = @transform_0, window_bounds = array<i64: 384, 49>}, {pipeline_mode = #tpu.pipeline_mode<synchronous>, transform_indices = @transform_1, window_bounds = array<i64: 384, 49>}, {transform_indices = @transform_2, window_bounds = array<i64: 1152, 384>}, {transform_indices = @transform_3, window_bounds = array<i64: 1152, 49>}]} {
    %c0 = arith.constant 0 : index
    %c0_0 = arith.constant 0 : index
    %0 = vector.load %arg1[%c0, %c0_0] : memref<384x49xf32, #tpu.memory_space<vmem>>, vector<384x49xf32>
    %c0_1 = arith.constant 0 : index
    %c0_2 = arith.constant 0 : index
    %1 = vector.load %arg2[%c0_1, %c0_2] : memref<384x49xf32, #tpu.memory_space<vmem>>, vector<384x49xf32>
    %2 = arith.addf %0, %1 : vector<384x49xf32>
    %3 = arith.truncf %2 : vector<384x49xf32> to vector<384x49xbf16>
    %c0_3 = arith.constant 0 : index
    %c0_4 = arith.constant 0 : index
    %4 = vector.load %arg3[%c0_3, %c0_4] : memref<1152x384xbf16, #tpu.memory_space<vmem>>, vector<1152x384xbf16>
    %cst = arith.constant dense<0.000000e+00> : vector<1152x49xf32>
    %5 = tpu.matmul %4, %3, %cst {dimension_numbers = #tpu.dot_dimension_numbers<[1], [0], [0], [1], [0, 0, 1, 1], [], []>} : vector<1152x384xbf16>, vector<384x49xbf16>, vector<1152x49xf32> -> vector<1152x49xf32>
    %c0_5 = arith.constant 0 : index
    %c0_6 = arith.constant 0 : index
    %6 = vector.load %arg4[%c0_5, %c0_6] : memref<1152x49xf32, #tpu.memory_space<vmem>>, vector<1152x49xf32>
    tpu.vector_store %arg4[%c0_5, %c0_6], %5 {strides = array<i32>} : memref<1152x49xf32, #tpu.memory_space<vmem>>, vector<1152x49xf32>,
    return
  }
  func.func @transform_0(%arg0: i32) -> (i32, i32) {
    %c0_i32 = arith.constant 0 : i32
    %c0_i32_0 = arith.constant 0 : i32
    %c0_i32_1 = arith.constant 0 : i32
    return %c0_i32, %c0_i32_0 : i32, i32
  }
  func.func @transform_1(%arg0: i32) -> (i32, i32) {
    %c0_i32 = arith.constant 0 : i32
    %c0_i32_0 = arith.constant 0 : i32
    %c0_i32_1 = arith.constant 0 : i32
    return %c0_i32, %c0_i32_0 : i32, i32
  }
  func.func @transform_2(%arg0: i32) -> (i32, i32) {
    %c0_i32 = arith.constant 0 : i32
    %c0_i32_0 = arith.constant 0 : i32
    return %arg0, %c0_i32 : i32, i32
  }
  func.func @transform_3(%arg0: i32) -> (i32, i32) {
    %c0_i32 = arith.constant 0 : i32
    %c0_i32_0 = arith.constant 0 : i32
    return %arg0, %c0_i32 : i32, i32
  }
}

</mosaic_0001>

<llo_original>
// kernel: module_forward.1
$region0: #{module_forward.1}
  #allocation0 [shape = 'u32[]', space=smem, size = 0x4, offset = 0x4, fixed_abs, tag = 'smem constant byte address 0x4 - core index']
  #allocation1 [shape = 'u32[144,128]{1,0:T(1,128)}', space=vmem, size = 0x12000, scoped, tag = 'internal scratch']
  %s0 = inlined_call_operand.vmem [shape: f32[384,49], index: 0, kind: input, shape index: {}]
  %s1 = inlined_call_operand.vmem [shape: f32[384,49], index: 1, kind: input, shape index: {}]
  %s2 = inlined_call_operand.hbm [shape: bf16[2304,384], index: 2, kind: input, shape index: {}]
  %s3 = inlined_call_operand.vmem [shape: f32[2304,49], index: 3, kind: output, shape index: {}]
  %s4 = sld [smem:[#allocation0]]
  $region49: #{module_forward.1} parent=0
    _
  %s6 = ssub.s32 1, %s4
  %s7 = scalar_select 0, %s6, %s4
  $region1: #{module_forward.1} parent=0
    #allocation2 [shape = 'u8[1769472]{0}', space=vmem, size = 0x1b0000, scoped, tag = 'input window, operand 2']
    #allocation3 [shape = 's32[2]{0}', space=sflag, size = 0x8, scoped, tag = 'scoped memory for module_forward.1']
    %8 = vsyncpa [#allocation3], 0
    %s9 = scalar_lea.sflag [#allocation3], 1
    %10 = vsyncpa %s9, 0
    loop: start=0, step=1, limit=4
    $region2: #{module_forward.1} parent=1 // loop_pre_header
      _
    $region3: #{module_forward.1} parent=1 // loop_header
      %s12 = sphi 0, %s16
      %p13 = scmp.ge.s32.totalorder %s12, 4
      %s20 = sphi 0, %s20
      %s22 = sphi 0, %s20
      %s23 = sphi 0, %s22
      %s37 = sphi 0, %s23
      %s41 = sphi 0, %s41
      %s43 = sphi 0, %s41
      %s44 = sphi 0, %s43
      %s58 = sphi 0, %s44
      %s64 = sphi 0, %s66
      %s67 = sphi 0, %s64
      %s68 = sphi 0, %s67
      %s84 = sphi 0, %s68
      %s90 = sphi 0, %s92
      %s93 = sphi 0, %s90
      %s94 = sphi 0, %s93
      %s110 = sphi 0, %s94
    $region4: #{module_forward.1} parent=1 // loop_header_branch
      %15 = sbr.rel (%p13) target = $region8
    $region5: #{module_forward.1} parent=1 // loop_body
      %s17 = ssub.s32 %s12, 1
      %s18 = ssub.s32 %s12, 2
      %s19 = sadd.s32 %s12, 1
      %s21 = sadd.s32 %s20, 1
      %p24 = scmp.eq.s32.totalorder %s12, 1
      %p25 = scmp.ne.s32.totalorder %s20, %s22
      %p26 = scmp.eq.s32.totalorder %s12, 0
      %p27 = por %p25, %p26
      %p28 = scmp.ne.s32.totalorder %s20, %s22
      %p29 = scmp.eq.s32.totalorder %s17, 1
      %p30 = por %p28, %p29
      %p31 = scmp.ne.s32.totalorder %s22, %s23
      %p32 = scmp.eq.s32.totalorder %s17, 0
      %p33 = por %p31, %p32
      %p34 = scmp.ne.s32.totalorder %s22, %s23
      %p35 = scmp.eq.s32.totalorder %s18, 1
      %p36 = por %p34, %p35
      %p38 = scmp.ne.s32.totalorder %s23, %s37
      %p39 = scmp.eq.s32.totalorder %s18, 0
      %p40 = por %p38, %p39
      %s42 = sadd.s32 %s41, 1
      %p45 = scmp.eq.s32.totalorder %s12, 1
      %p46 = scmp.ne.s32.totalorder %s41, %s43
      %p47 = scmp.eq.s32.totalorder %s12, 0
      %p48 = por %p46, %p47
      %p49 = scmp.ne.s32.totalorder %s41, %s43
      %p50 = scmp.eq.s32.totalorder %s17, 1
      %p51 = por %p49, %p50
      %p52 = scmp.ne.s32.totalorder %s43, %s44
      %p53 = scmp.eq.s32.totalorder %s17, 0
      %p54 = por %p52, %p53
      %p55 = scmp.ne.s32.totalorder %s43, %s44
      %p56 = scmp.eq.s32.totalorder %s18, 1
      %p57 = por %p55, %p56
      %p59 = scmp.ne.s32.totalorder %s44, %s58
      %p60 = scmp.eq.s32.totalorder %s18, 0
      %p61 = por %p59, %p60
      %s62 = ssub.s32 %s12, %s19
      %p63 = scmp.eq.s32.totalorder %s62, 0
      %s65 = sadd.s32 %s64, 1
      %s66 = scalar_select %p63, %s64, %s65
      %p69 = pneg %p63
      %p70 = scmp.eq.s32.totalorder %s12, 1
      %p71 = por %p69, %p70
      %p72 = scmp.ne.s32.totalorder %s64, %s67
      %p73 = scmp.eq.s32.totalorder %s12, 0
      %p74 = por %p72, %p73
      %p75 = scmp.ne.s32.totalorder %s64, %s67
      %p76 = scmp.eq.s32.totalorder %s17, 1
      %p77 = por %p75, %p76
      %p78 = scmp.ne.s32.totalorder %s67, %s68
      %p79 = scmp.eq.s32.totalorder %s17, 0
      %p80 = por %p78, %p79
      %p81 = scmp.ne.s32.totalorder %s67, %s68
      %p82 = scmp.eq.s32.totalorder %s18, 1
      %p83 = por %p81, %p82
      %p85 = scmp.ne.s32.totalorder %s68, %s84
      %p86 = scmp.eq.s32.totalorder %s18, 0
      %p87 = por %p85, %p86
      %s88 = ssub.s32 %s12, %s19
      %p89 = scmp.eq.s32.totalorder %s88, 0
      %s91 = sadd.s32 %s90, 1
      %s92 = scalar_select %p89, %s90, %s91
      %p95 = pneg %p89
      %p96 = scmp.eq.s32.totalorder %s12, 1
      %p97 = por %p95, %p96
      %p98 = scmp.ne.s32.totalorder %s90, %s93
      %p99 = scmp.eq.s32.totalorder %s12, 0
      %p100 = por %p98, %p99
      %p101 = scmp.ne.s32.totalorder %s90, %s93
      %p102 = scmp.eq.s32.totalorder %s17, 1
      %p103 = por %p101, %p102
      %p104 = scmp.ne.s32.totalorder %s93, %s94
      %p105 = scmp.eq.s32.totalorder %s17, 0
      %p106 = por %p104, %p105
      %p107 = scmp.ne.s32.totalorder %s93, %s94
      %p108 = scmp.eq.s32.totalorder %s18, 1
      %p109 = por %p107, %p108
      %p111 = scmp.ne.s32.totalorder %s94, %s110
      %p112 = scmp.eq.s32.totalorder %s18, 0
      %p113 = por %p111, %p112
      %p114 = scmp.le.s32.totalorder 1, %s12
      %p115 = scmp.lt.s32.totalorder %s12, 3
      %p116 = pnand %p114, %p115
      %p117 = pneg %p116
      // Predicated region
      $region9: #{module_forward.1} parent=5 // pred_check
        _
      $region10: #{module_forward.1} parent=5 // pred_check_branch
        %119 = sbr.rel (%p116) target = $region12
      $region11: #{module_forward.1} parent=5 // pred_region
        %s120 = ssub.s32 %s12, 1
        // Predicated region
        $region13: #{module_forward.1} parent=11 // pred_check
          %p121 = pneg %p33
        $region14: #{module_forward.1} parent=11 // pred_check_branch
          %123 = sbr.rel (%p121) target = $region16
        $region15: #{module_forward.1} parent=11 // pred_region
          _
        $region16: #{module_forward.1} parent=11 // pred_fallthru
          _
        // Predicated region
        $region17: #{module_forward.1} parent=11 // pred_check
          %p124 = pneg %p54
        $region18: #{module_forward.1} parent=11 // pred_check_branch
          %126 = sbr.rel (%p124) target = $region20
        $region19: #{module_forward.1} parent=11 // pred_region
          _
        $region20: #{module_forward.1} parent=11 // pred_fallthru
          _
      $region12: #{module_forward.1} parent=5 // pred_fallthru
        _
      %p127 = scmp.lt.s32.totalorder %s12, 2
      // Predicated region
      $region21: #{module_forward.1} parent=5 // pred_check
        %p128 = pneg %p127
      $region22: #{module_forward.1} parent=5 // pred_check_branch
        %130 = sbr.rel (%p128) target = $region24
      $region23: #{module_forward.1} parent=5 // pred_region
        // Predicated region
        $region25: #{module_forward.1} parent=23 // pred_check
          %p131 = pneg %p74
        $region26: #{module_forward.1} parent=23 // pred_check_branch
          %133 = sbr.rel (%p131) target = $region28
        $region27: #{module_forward.1} parent=23 // pred_region
          %s134 = sand.u32 %s64, 1
          %s135 = scalar_lea.sflag [#allocation3], %s134
          %s136 = sand.u32 %s64, 1
          %s137 = smul.addr %s136, 1728
          %s138 = scalar_lea.vmem [#allocation2], %s137
          %s139 = smul.u32 144, %s12
          %s141 = ssub.s32 27648, 27648
          %142 = vsyncadd %s135, %s141
          %s143 = smul.addr %s139, 3
          %s144 = smul.addr %s143, 64
          %s145 = scalar_lea.hbm %s2, %s144
          %s146 = sshll.u32 %s138, 4
          %s147 = int_to_ptr.vmem [resolvable:$true] %s146
          %152 = dma.hbm_to_vmem [thread:$0]  %s145, 27648, %s147, %s135, 192, 192, 12
        $region28: #{module_forward.1} parent=23 // pred_fallthru
          _
      $region24: #{module_forward.1} parent=5 // pred_fallthru
        _
      %p153 = scmp.le.s32.totalorder 1, %s12
      %p154 = scmp.lt.s32.totalorder %s12, 3
      %p155 = pnand %p153, %p154
      %p156 = pneg %p155
      // Predicated region
      $region29: #{module_forward.1} parent=5 // pred_check
        _
      $region30: #{module_forward.1} parent=5 // pred_check_branch
        %158 = sbr.rel (%p155) target = $region32
      $region31: #{module_forward.1} parent=5 // pred_region
        %s159 = ssub.s32 %s12, 1
        %s160 = sand.u32 %s67, 1
        %s161 = scalar_lea.sflag [#allocation3], %s160
        %s162 = sand.u32 %s67, 1
        %s163 = smul.addr %s162, 1728
        %s164 = scalar_lea.vmem [#allocation2], %s163
        // Predicated region
        $region33: #{module_forward.1} parent=31 // pred_check
          %p165 = pneg %p80
        $region34: #{module_forward.1} parent=31 // pred_check_branch
          %167 = sbr.rel (%p165) target = $region36
        $region35: #{module_forward.1} parent=31 // pred_region
          %168 = dma.done %s161, 27648
        $region36: #{module_forward.1} parent=31 // pred_fallthru
          _
        %p169 = pneg %p33
        %p170 = pneg %p30
        %p171 = pneg %p54
        %p172 = pneg %p51
        %s173 = sand.u32 %s67, 1
        %s174 = scalar_lea.sflag [#allocation3], %s173
        %s175 = sand.u32 %s67, 1
        %s176 = smul.addr %s175, 1728
        %s177 = scalar_lea.vmem [#allocation2], %s176
        %p178 = pneg %p80
        %p179 = pneg %p77
        %p180 = pneg %p106
        %p181 = pneg %p103
        %s182 = smul.u32 144, %s17
        %p183 = scmp.lt.s32.totalorder %s182, 287
        %s184 = scalar_select %p183, %s182, 287
        %s185 = smul.addr %s184, 8
        %s186 = scalar_lea.vmem %s3, %s185
        %s187 = smul.u32 144, %s17
        %s188 = smul.u32 144, %s17
        %p189 = scmp.lt.s32.totalorder %s188, 287
        %s190 = scalar_select %p189, %s188, 287
        %s191 = smul.addr %s190, 8
        %s192 = scalar_lea.vmem %s3, %s191
        %s193 = smul.u32 144, %s17
        %v195 = vld [vmem:[%s0] sm:$0xff]
        %v196 = vld [vmem:[%s0 + $0x8] sm:$0xff]
        %v197 = vld [vmem:[%s0 + $0x10] sm:$0xff]
        %v198 = vld [vmem:[%s0 + $0x18] sm:$0xff]
        %v199 = vld [vmem:[%s0 + $0x20] sm:$0xff]
        %v200 = vld [vmem:[%s0 + $0x28] sm:$0xff]
        %v201 = vld [vmem:[%s0 + $0x30] sm:$0xff]
        %v202 = vld [vmem:[%s0 + $0x38] sm:$0xff]
        %v203 = vld [vmem:[%s0 + $0x40] sm:$0xff]
        %v204 = vld [vmem:[%s0 + $0x48] sm:$0xff]
        %v205 = vld [vmem:[%s0 + $0x50] sm:$0xff]
        %v206 = vld [vmem:[%s0 + $0x58] sm:$0xff]
        %v207 = vld [vmem:[%s0 + $0x60] sm:$0xff]
        %v208 = vld [vmem:[%s0 + $0x68] sm:$0xff]
        %v209 = vld [vmem:[%s0 + $0x70] sm:$0xff]
        %v210 = vld [vmem:[%s0 + $0x78] sm:$0xff]
        %v211 = vld [vmem:[%s0 + $0x80] sm:$0xff]
        %v212 = vld [vmem:[%s0 + $0x88] sm:$0xff]
        %v213 = vld [vmem:[%s0 + $0x90] sm:$0xff]
        %v214 = vld [vmem:[%s0 + $0x98] sm:$0xff]
        %v215 = vld [vmem:[%s0 + $0xa0] sm:$0xff]
        %v216 = vld [vmem:[%s0 + $0xa8] sm:$0xff]
        %v217 = vld [vmem:[%s0 + $0xb0] sm:$0xff]
        %v218 = vld [vmem:[%s0 + $0xb8] sm:$0xff]
        %v219 = vld [vmem:[%s0 + $0xc0] sm:$0xff]
        %v220 = vld [vmem:[%s0 + $0xc8] sm:$0xff]
        %v221 = vld [vmem:[%s0 + $0xd0] sm:$0xff]
        %v222 = vld [vmem:[%s0 + $0xd8] sm:$0xff]
        %v223 = vld [vmem:[%s0 + $0xe0] sm:$0xff]
        %v224 = vld [vmem:[%s0 + $0xe8] sm:$0xff]
        %v225 = vld [vmem:[%s0 + $0xf0] sm:$0xff]
        %v226 = vld [vmem:[%s0 + $0xf8] sm:$0xff]
        %v227 = vld [vmem:[%s0 + $0x100] sm:$0xff]
        %v228 = vld [vmem:[%s0 + $0x108] sm:$0xff]
        %v229 = vld [vmem:[%s0 + $0x110] sm:$0xff]
        %v230 = vld [vmem:[%s0 + $0x118] sm:$0xff]
        %v231 = vld [vmem:[%s0 + $0x120] sm:$0xff]
        %v232 = vld [vmem:[%s0 + $0x128] sm:$0xff]
        %v233 = vld [vmem:[%s0 + $0x130] sm:$0xff]
        %v234 = vld [vmem:[%s0 + $0x138] sm:$0xff]
        %v235 = vld [vmem:[%s0 + $0x140] sm:$0xff]
        %v236 = vld [vmem:[%s0 + $0x148] sm:$0xff]
        %v237 = vld [vmem:[%s0 + $0x150] sm:$0xff]
        %v238 = vld [vmem:[%s0 + $0x158] sm:$0xff]
        %v239 = vld [vmem:[%s0 + $0x160] sm:$0xff]
        %v240 = vld [vmem:[%s0 + $0x168] sm:$0xff]
        %v241 = vld [vmem:[%s0 + $0x170] sm:$0xff]
        %v242 = vld [vmem:[%s0 + $0x178] sm:$0xff]
        %v243 = vld [vmem:[%s1] sm:$0xff]
        %v244 = vld [vmem:[%s1 + $0x8] sm:$0xff]
        %v245 = vld [vmem:[%s1 + $0x10] sm:$0xff]
        %v246 = vld [vmem:[%s1 + $0x18] sm:$0xff]
        %v247 = vld [vmem:[%s1 + $0x20] sm:$0xff]
        %v248 = vld [vmem:[%s1 + $0x28] sm:$0xff]
        %v249 = vld [vmem:[%s1 + $0x30] sm:$0xff]
        %v250 = vld [vmem:[%s1 + $0x38] sm:$0xff]
        %v251 = vld [vmem:[%s1 + $0x40] sm:$0xff]
        %v252 = vld [vmem:[%s1 + $0x48] sm:$0xff]
        %v253 = vld [vmem:[%s1 + $0x50] sm:$0xff]
        %v254 = vld [vmem:[%s1 + $0x58] sm:$0xff]
        %v255 = vld [vmem:[%s1 + $0x60] sm:$0xff]
        %v256 = vld [vmem:[%s1 + $0x68] sm:$0xff]
        %v257 = vld [vmem:[%s1 + $0x70] sm:$0xff]
        %v258 = vld [vmem:[%s1 + $0x78] sm:$0xff]
        %v259 = vld [vmem:[%s1 + $0x80] sm:$0xff]
        %v260 = vld [vmem:[%s1 + $0x88] sm:$0xff]
        %v261 = vld [vmem:[%s1 + $0x90] sm:$0xff]
        %v262 = vld [vmem:[%s1 + $0x98] sm:$0xff]
        %v263 = vld [vmem:[%s1 + $0xa0] sm:$0xff]
        %v264 = vld [vmem:[%s1 + $0xa8] sm:$0xff]
        %v265 = vld [vmem:[%s1 + $0xb0] sm:$0xff]
        %v266 = vld [vmem:[%s1 + $0xb8] sm:$0xff]
        %v267 = vld [vmem:[%s1 + $0xc0] sm:$0xff]
        %v268 = vld [vmem:[%s1 + $0xc8] sm:$0xff]
        %v269 = vld [vmem:[%s1 + $0xd0] sm:$0xff]
        %v270 = vld [vmem:[%s1 + $0xd8] sm:$0xff]
        %v271 = vld [vmem:[%s1 + $0xe0] sm:$0xff]
        %v272 = vld [vmem:[%s1 + $0xe8] sm:$0xff]
        %v273 = vld [vmem:[%s1 + $0xf0] sm:$0xff]
        %v274 = vld [vmem:[%s1 + $0xf8] sm:$0xff]
        %v275 = vld [vmem:[%s1 + $0x100] sm:$0xff]
        %v276 = vld [vmem:[%s1 + $0x108] sm:$0xff]
        %v277 = vld [vmem:[%s1 + $0x110] sm:$0xff]
        %v278 = vld [vmem:[%s1 + $0x118] sm:$0xff]
        %v279 = vld [vmem:[%s1 + $0x120] sm:$0xff]
        %v280 = vld [vmem:[%s1 + $0x128] sm:$0xff]
        %v281 = vld [vmem:[%s1 + $0x130] sm:$0xff]
        %v282 = vld [vmem:[%s1 + $0x138] sm:$0xff]
        %v283 = vld [vmem:[%s1 + $0x140] sm:$0xff]
        %v284 = vld [vmem:[%s1 + $0x148] sm:$0xff]
        %v285 = vld [vmem:[%s1 + $0x150] sm:$0xff]
        %v286 = vld [vmem:[%s1 + $0x158] sm:$0xff]
        %v287 = vld [vmem:[%s1 + $0x160] sm:$0xff]
        %v288 = vld [vmem:[%s1 + $0x168] sm:$0xff]
        %v289 = vld [vmem:[%s1 + $0x170] sm:$0xff]
        %v290 = vld [vmem:[%s1 + $0x178] sm:$0xff]
        %v291 = vadd.f32 %v195, %v243
        %v292 = vadd.f32 %v196, %v244
        %v293 = vadd.f32 %v197, %v245
        %v294 = vadd.f32 %v198, %v246
        %v295 = vadd.f32 %v199, %v247
        %v296 = vadd.f32 %v200, %v248
        %v297 = vadd.f32 %v201, %v249
        %v298 = vadd.f32 %v202, %v250
        %v299 = vadd.f32 %v203, %v251
        %v300 = vadd.f32 %v204, %v252
        %v301 = vadd.f32 %v205, %v253
        %v302 = vadd.f32 %v206, %v254
        %v303 = vadd.f32 %v207, %v255
        %v304 = vadd.f32 %v208, %v256
        %v305 = vadd.f32 %v209, %v257
        %v306 = vadd.f32 %v210, %v258
        %v307 = vadd.f32 %v211, %v259
        %v308 = vadd.f32 %v212, %v260
        %v309 = vadd.f32 %v213, %v261
        %v310 = vadd.f32 %v214, %v262
        %v311 = vadd.f32 %v215, %v263
        %v312 = vadd.f32 %v216, %v264
        %v313 = vadd.f32 %v217, %v265
        %v314 = vadd.f32 %v218, %v266
        %v315 = vadd.f32 %v219, %v267
        %v316 = vadd.f32 %v220, %v268
        %v317 = vadd.f32 %v221, %v269
        %v318 = vadd.f32 %v222, %v270
        %v319 = vadd.f32 %v223, %v271
        %v320 = vadd.f32 %v224, %v272
        %v321 = vadd.f32 %v225, %v273
        %v322 = vadd.f32 %v226, %v274
        %v323 = vadd.f32 %v227, %v275
        %v324 = vadd.f32 %v228, %v276
        %v325 = vadd.f32 %v229, %v277
        %v326 = vadd.f32 %v230, %v278
        %v327 = vadd.f32 %v231, %v279
        %v328 = vadd.f32 %v232, %v280
        %v329 = vadd.f32 %v233, %v281
        %v330 = vadd.f32 %v234, %v282
        %v331 = vadd.f32 %v235, %v283
        %v332 = vadd.f32 %v236, %v284
        %v333 = vadd.f32 %v237, %v285
        %v334 = vadd.f32 %v238, %v286
        %v335 = vadd.f32 %v239, %v287
        %v336 = vadd.f32 %v240, %v288
        %v337 = vadd.f32 %v241, %v289
        %v338 = vadd.f32 %v242, %v290
        %v339 = vpack.c.bf16 %v292, %v291
        %v340 = vpack.c.bf16 %v294, %v293
        %v341 = vpack.c.bf16 %v296, %v295
        %v342 = vpack.c.bf16 %v298, %v297
        %v343 = vpack.c.bf16 %v300, %v299
        %v344 = vpack.c.bf16 %v302, %v301
        %v345 = vpack.c.bf16 %v304, %v303
        %v346 = vpack.c.bf16 %v306, %v305
        %v347 = vpack.c.bf16 %v308, %v307
        %v348 = vpack.c.bf16 %v310, %v309
        %v349 = vpack.c.bf16 %v312, %v311
        %v350 = vpack.c.bf16 %v314, %v313
        %v351 = vpack.c.bf16 %v316, %v315
        %v352 = vpack.c.bf16 %v318, %v317
        %v353 = vpack.c.bf16 %v320, %v319
        %v354 = vpack.c.bf16 %v322, %v321
        %v355 = vpack.c.bf16 %v324, %v323
        %v356 = vpack.c.bf16 %v326, %v325
        %v357 = vpack.c.bf16 %v328, %v327
        %v358 = vpack.c.bf16 %v330, %v329
        %v359 = vpack.c.bf16 %v332, %v331
        %v360 = vpack.c.bf16 %v334, %v333
        %v361 = vpack.c.bf16 %v336, %v335
        %v362 = vpack.c.bf16 %v338, %v337
        %v363 = vld [vmem:[%s164] sm:$0xff]
        %v364 = vld [vmem:[%s164 + $0x8] sm:$0xf]
        %v365 = vld [vmem:[%s164 + $0xc] sm:$0xff]
        %v366 = vld [vmem:[%s164 + $0x14] sm:$0xf]
        %v367 = vld [vmem:[%s164 + $0x18] sm:$0xff]
        %v368 = vld [vmem:[%s164 + $0x20] sm:$0xf]
        %v369 = vld [vmem:[%s164 + $0x24] sm:$0xff]
        %v370 = vld [vmem:[%s164 + $0x2c] sm:$0xf]
        %v371 = vld [vmem:[%s164 + $0x30] sm:$0xff]
        %v372 = vld [vmem:[%s164 + $0x38] sm:$0xf]
        %v373 = vld [vmem:[%s164 + $0x3c] sm:$0xff]
        %v374 = vld [vmem:[%s164 + $0x44] sm:$0xf]
        %v375 = vld [vmem:[%s164 + $0x48] sm:$0xff]
        %v376 = vld [vmem:[%s164 + $0x50] sm:$0xf]
        %v377 = vld [vmem:[%s164 + $0x54] sm:$0xff]
        %v378 = vld [vmem:[%s164 + $0x5c] sm:$0xf]
        %v379 = vld [vmem:[%s164 + $0x60] sm:$0xff]
        %v380 = vld [vmem:[%s164 + $0x68] sm:$0xf]
        %v381 = vld [vmem:[%s164 + $0x6c] sm:$0xff]
        %v382 = vld [vmem:[%s164 + $0x74] sm:$0xf]
        %v383 = vld [vmem:[%s164 + $0x78] sm:$0xff]
        %v384 = vld [vmem:[%s164 + $0x80] sm:$0xf]
        %v385 = vld [vmem:[%s164 + $0x84] sm:$0xff]
        %v386 = vld [vmem:[%s164 + $0x8c] sm:$0xf]
        %v387 = vld [vmem:[%s164 + $0x90] sm:$0xff]
        %v388 = vld [vmem:[%s164 + $0x98] sm:$0xf]
        %v389 = vld [vmem:[%s164 + $0x9c] sm:$0xff]
        %v390 = vld [vmem:[%s164 + $0xa4] sm:$0xf]
        %v391 = vld [vmem:[%s164 + $0xa8] sm:$0xff]
        %v392 = vld [vmem:[%s164 + $0xb0] sm:$0xf]
        %v393 = vld [vmem:[%s164 + $0xb4] sm:$0xff]
        %v394 = vld [vmem:[%s164 + $0xbc] sm:$0xf]
        %v395 = vld [vmem:[%s164 + $0xc0] sm:$0xff]
        %v396 = vld [vmem:[%s164 + $0xc8] sm:$0xf]
        %v397 = vld [vmem:[%s164 + $0xcc] sm:$0xff]
        %v398 = vld [vmem:[%s164 + $0xd4] sm:$0xf]
        %v399 = vld [vmem:[%s164 + $0xd8] sm:$0xff]
        %v400 = vld [vmem:[%s164 + $0xe0] sm:$0xf]
        %v401 = vld [vmem:[%s164 + $0xe4] sm:$0xff]
        %v402 = vld [vmem:[%s164 + $0xec] sm:$0xf]
        %v403 = vld [vmem:[%s164 + $0xf0] sm:$0xff]
        %v404 = vld [vmem:[%s164 + $0xf8] sm:$0xf]
        %v405 = vld [vmem:[%s164 + $0xfc] sm:$0xff]
        %v406 = vld [vmem:[%s164 + $0x104] sm:$0xf]
        %v407 = vld [vmem:[%s164 + $0x108] sm:$0xff]
        %v408 = vld [vmem:[%s164 + $0x110] sm:$0xf]
        %v409 = vld [vmem:[%s164 + $0x114] sm:$0xff]
        %v410 = vld [vmem:[%s164 + $0x11c] sm:$0xf]
        %v411 = vld [vmem:[%s164 + $0x120] sm:$0xff]
        %v412 = vld [vmem:[%s164 + $0x128] sm:$0xf]
        %v413 = vld [vmem:[%s164 + $0x12c] sm:$0xff]
        %v414 = vld [vmem:[%s164 + $0x134] sm:$0xf]
        %v415 = vld [vmem:[%s164 + $0x138] sm:$0xff]
        %v416 = vld [vmem:[%s164 + $0x140] sm:$0xf]
        %v417 = vld [vmem:[%s164 + $0x144] sm:$0xff]
        %v418 = vld [vmem:[%s164 + $0x14c] sm:$0xf]
        %v419 = vld [vmem:[%s164 + $0x150] sm:$0xff]
        %v420 = vld [vmem:[%s164 + $0x158] sm:$0xf]
        %v421 = vld [vmem:[%s164 + $0x15c] sm:$0xff]
        %v422 = vld [vmem:[%s164 + $0x164] sm:$0xf]
        %v423 = vld [vmem:[%s164 + $0x168] sm:$0xff]
        %v424 = vld [vmem:[%s164 + $0x170] sm:$0xf]
        %v425 = vld [vmem:[%s164 + $0x174] sm:$0xff]
        %v426 = vld [vmem:[%s164 + $0x17c] sm:$0xf]
        %v427 = vld [vmem:[%s164 + $0x180] sm:$0xff]
        %v428 = vld [vmem:[%s164 + $0x188] sm:$0xf]
        %v429 = vld [vmem:[%s164 + $0x18c] sm:$0xff]
        %v430 = vld [vmem:[%s164 + $0x194] sm:$0xf]
        %v431 = vld [vmem:[%s164 + $0x198] sm:$0xff]
        %v432 = vld [vmem:[%s164 + $0x1a0] sm:$0xf]
        %v433 = vld [vmem:[%s164 + $0x1a4] sm:$0xff]
        %v434 = vld [vmem:[%s164 + $0x1ac] sm:$0xf]
        %v435 = vld [vmem:[%s164 + $0x1b0] sm:$0xff]
        %v436 = vld [vmem:[%s164 + $0x1b8] sm:$0xf]
        %v437 = vld [vmem:[%s164 + $0x1bc] sm:$0xff]
        %v438 = vld [vmem:[%s164 + $0x1c4] sm:$0xf]
        %v439 = vld [vmem:[%s164 + $0x1c8] sm:$0xff]
        %v440 = vld [vmem:[%s164 + $0x1d0] sm:$0xf]
        %v441 = vld [vmem:[%s164 + $0x1d4] sm:$0xff]
        %v442 = vld [vmem:[%s164 + $0x1dc] sm:$0xf]
        %v443 = vld [vmem:[%s164 + $0x1e0] sm:$0xff]
        %v444 = vld [vmem:[%s164 + $0x1e8] sm:$0xf]
        %v445 = vld [vmem:[%s164 + $0x1ec] sm:$0xff]
        %v446 = vld [vmem:[%s164 + $0x1f4] sm:$0xf]
        %v447 = vld [vmem:[%s164 + $0x1f8] sm:$0xff]
        %v448 = vld [vmem:[%s164 + $0x200] sm:$0xf]
        %v449 = vld [vmem:[%s164 + $0x204] sm:$0xff]
        %v450 = vld [vmem:[%s164 + $0x20c] sm:$0xf]
        %v451 = vld [vmem:[%s164 + $0x210] sm:$0xff]
        %v452 = vld [vmem:[%s164 + $0x218] sm:$0xf]
        %v453 = vld [vmem:[%s164 + $0x21c] sm:$0xff]
        %v454 = vld [vmem:[%s164 + $0x224] sm:$0xf]
        %v455 = vld [vmem:[%s164 + $0x228] sm:$0xff]
        %v456 = vld [vmem:[%s164 + $0x230] sm:$0xf]
        %v457 = vld [vmem:[%s164 + $0x234] sm:$0xff]
        %v458 = vld [vmem:[%s164 + $0x23c] sm:$0xf]
        %v459 = vld [vmem:[%s164 + $0x240] sm:$0xff]
        %v460 = vld [vmem:[%s164 + $0x248] sm:$0xf]
        %v461 = vld [vmem:[%s164 + $0x24c] sm:$0xff]
        %v462 = vld [vmem:[%s164 + $0x254] sm:$0xf]
        %v463 = vld [vmem:[%s164 + $0x258] sm:$0xff]
        %v464 = vld [vmem:[%s164 + $0x260] sm:$0xf]
        %v465 = vld [vmem:[%s164 + $0x264] sm:$0xff]
        %v466 = vld [vmem:[%s164 + $0x26c] sm:$0xf]
        %v467 = vld [vmem:[%s164 + $0x270] sm:$0xff]
        %v468 = vld [vmem:[%s164 + $0x278] sm:$0xf]
        %v469 = vld [vmem:[%s164 + $0x27c] sm:$0xff]
        %v470 = vld [vmem:[%s164 + $0x284] sm:$0xf]
        %v471 = vld [vmem:[%s164 + $0x288] sm:$0xff]
        %v472 = vld [vmem:[%s164 + $0x290] sm:$0xf]
        %v473 = vld [vmem:[%s164 + $0x294] sm:$0xff]
        %v474 = vld [vmem:[%s164 + $0x29c] sm:$0xf]
        %v475 = vld [vmem:[%s164 + $0x2a0] sm:$0xff]
        %v476 = vld [vmem:[%s164 + $0x2a8] sm:$0xf]
        %v477 = vld [vmem:[%s164 + $0x2ac] sm:$0xff]
        %v478 = vld [vmem:[%s164 + $0x2b4] sm:$0xf]
        %v479 = vld [vmem:[%s164 + $0x2b8] sm:$0xff]
        %v480 = vld [vmem:[%s164 + $0x2c0] sm:$0xf]
        %v481 = vld [vmem:[%s164 + $0x2c4] sm:$0xff]
        %v482 = vld [vmem:[%s164 + $0x2cc] sm:$0xf]
        %v483 = vld [vmem:[%s164 + $0x2d0] sm:$0xff]
        %v484 = vld [vmem:[%s164 + $0x2d8] sm:$0xf]
        %v485 = vld [vmem:[%s164 + $0x2dc] sm:$0xff]
        %v486 = vld [vmem:[%s164 + $0x2e4] sm:$0xf]
        %v487 = vld [vmem:[%s164 + $0x2e8] sm:$0xff]
        %v488 = vld [vmem:[%s164 + $0x2f0] sm:$0xf]
        %v489 = vld [vmem:[%s164 + $0x2f4] sm:$0xff]
        %v490 = vld [vmem:[%s164 + $0x2fc] sm:$0xf]
        %v491 = vld [vmem:[%s164 + $0x300] sm:$0xff]
        %v492 = vld [vmem:[%s164 + $0x308] sm:$0xf]
        %v493 = vld [vmem:[%s164 + $0x30c] sm:$0xff]
        %v494 = vld [vmem:[%s164 + $0x314] sm:$0xf]
        %v495 = vld [vmem:[%s164 + $0x318] sm:$0xff]
        %v496 = vld [vmem:[%s164 + $0x320] sm:$0xf]
        %v497 = vld [vmem:[%s164 + $0x324] sm:$0xff]
        %v498 = vld [vmem:[%s164 + $0x32c] sm:$0xf]
        %v499 = vld [vmem:[%s164 + $0x330] sm:$0xff]
        %v500 = vld [vmem:[%s164 + $0x338] sm:$0xf]
        %v501 = vld [vmem:[%s164 + $0x33c] sm:$0xff]
        %v502 = vld [vmem:[%s164 + $0x344] sm:$0xf]
        %v503 = vld [vmem:[%s164 + $0x348] sm:$0xff]
        %v504 = vld [vmem:[%s164 + $0x350] sm:$0xf]
        %v505 = vld [vmem:[%s164 + $0x354] sm:$0xff]
        %v506 = vld [vmem:[%s164 + $0x35c] sm:$0xf]
        %v507 = vld [vmem:[%s164 + $0x360] sm:$0xff]
        %v508 = vld [vmem:[%s164 + $0x368] sm:$0xf]
        %v509 = vld [vmem:[%s164 + $0x36c] sm:$0xff]
        %v510 = vld [vmem:[%s164 + $0x374] sm:$0xf]
        %v511 = vld [vmem:[%s164 + $0x378] sm:$0xff]
        %v512 = vld [vmem:[%s164 + $0x380] sm:$0xf]
        %v513 = vld [vmem:[%s164 + $0x384] sm:$0xff]
        %v514 = vld [vmem:[%s164 + $0x38c] sm:$0xf]
        %v515 = vld [vmem:[%s164 + $0x390] sm:$0xff]
        %v516 = vld [vmem:[%s164 + $0x398] sm:$0xf]
        %v517 = vld [vmem:[%s164 + $0x39c] sm:$0xff]
        %v518 = vld [vmem:[%s164 + $0x3a4] sm:$0xf]
        %v519 = vld [vmem:[%s164 + $0x3a8] sm:$0xff]
        %v520 = vld [vmem:[%s164 + $0x3b0] sm:$0xf]
        %v521 = vld [vmem:[%s164 + $0x3b4] sm:$0xff]
        %v522 = vld [vmem:[%s164 + $0x3bc] sm:$0xf]
        %v523 = vld [vmem:[%s164 + $0x3c0] sm:$0xff]
        %v524 = vld [vmem:[%s164 + $0x3c8] sm:$0xf]
        %v525 = vld [vmem:[%s164 + $0x3cc] sm:$0xff]
        %v526 = vld [vmem:[%s164 + $0x3d4] sm:$0xf]
        %v527 = vld [vmem:[%s164 + $0x3d8] sm:$0xff]
        %v528 = vld [vmem:[%s164 + $0x3e0] sm:$0xf]
        %v529 = vld [vmem:[%s164 + $0x3e4] sm:$0xff]
        %v530 = vld [vmem:[%s164 + $0x3ec] sm:$0xf]
        %v531 = vld [vmem:[%s164 + $0x3f0] sm:$0xff]
        %v532 = vld [vmem:[%s164 + $0x3f8] sm:$0xf]
        %v533 = vld [vmem:[%s164 + $0x3fc] sm:$0xff]
        %v534 = vld [vmem:[%s164 + $0x404] sm:$0xf]
        %v535 = vld [vmem:[%s164 + $0x408] sm:$0xff]
        %v536 = vld [vmem:[%s164 + $0x410] sm:$0xf]
        %v537 = vld [vmem:[%s164 + $0x414] sm:$0xff]
        %v538 = vld [vmem:[%s164 + $0x41c] sm:$0xf]
        %v539 = vld [vmem:[%s164 + $0x420] sm:$0xff]
        %v540 = vld [vmem:[%s164 + $0x428] sm:$0xf]
        %v541 = vld [vmem:[%s164 + $0x42c] sm:$0xff]
        %v542 = vld [vmem:[%s164 + $0x434] sm:$0xf]
        %v543 = vld [vmem:[%s164 + $0x438] sm:$0xff]
        %v544 = vld [vmem:[%s164 + $0x440] sm:$0xf]
        %v545 = vld [vmem:[%s164 + $0x444] sm:$0xff]
        %v546 = vld [vmem:[%s164 + $0x44c] sm:$0xf]
        %v547 = vld [vmem:[%s164 + $0x450] sm:$0xff]
        %v548 = vld [vmem:[%s164 + $0x458] sm:$0xf]
        %v549 = vld [vmem:[%s164 + $0x45c] sm:$0xff]
        %v550 = vld [vmem:[%s164 + $0x464] sm:$0xf]
        %v551 = vld [vmem:[%s164 + $0x468] sm:$0xff]
        %v552 = vld [vmem:[%s164 + $0x470] sm:$0xf]
        %v553 = vld [vmem:[%s164 + $0x474] sm:$0xff]
        %v554 = vld [vmem:[%s164 + $0x47c] sm:$0xf]
        %v555 = vld [vmem:[%s164 + $0x480] sm:$0xff]
        %v556 = vld [vmem:[%s164 + $0x488] sm:$0xf]
        %v557 = vld [vmem:[%s164 + $0x48c] sm:$0xff]
        %v558 = vld [vmem:[%s164 + $0x494] sm:$0xf]
        %v559 = vld [vmem:[%s164 + $0x498] sm:$0xff]
        %v560 = vld [vmem:[%s164 + $0x4a0] sm:$0xf]
        %v561 = vld [vmem:[%s164 + $0x4a4] sm:$0xff]
        %v562 = vld [vmem:[%s164 + $0x4ac] sm:$0xf]
        %v563 = vld [vmem:[%s164 + $0x4b0] sm:$0xff]
        %v564 = vld [vmem:[%s164 + $0x4b8] sm:$0xf]
        %v565 = vld [vmem:[%s164 + $0x4bc] sm:$0xff]
        %v566 = vld [vmem:[%s164 + $0x4c4] sm:$0xf]
        %v567 = vld [vmem:[%s164 + $0x4c8] sm:$0xff]
        %v568 = vld [vmem:[%s164 + $0x4d0] sm:$0xf]
        %v569 = vld [vmem:[%s164 + $0x4d4] sm:$0xff]
        %v570 = vld [vmem:[%s164 + $0x4dc] sm:$0xf]
        %v571 = vld [vmem:[%s164 + $0x4e0] sm:$0xff]
        %v572 = vld [vmem:[%s164 + $0x4e8] sm:$0xf]
        %v573 = vld [vmem:[%s164 + $0x4ec] sm:$0xff]
        %v574 = vld [vmem:[%s164 + $0x4f4] sm:$0xf]
        %v575 = vld [vmem:[%s164 + $0x4f8] sm:$0xff]
        %v576 = vld [vmem:[%s164 + $0x500] sm:$0xf]
        %v577 = vld [vmem:[%s164 + $0x504] sm:$0xff]
        %v578 = vld [vmem:[%s164 + $0x50c] sm:$0xf]
        %v579 = vld [vmem:[%s164 + $0x510] sm:$0xff]
        %v580 = vld [vmem:[%s164 + $0x518] sm:$0xf]
        %v581 = vld [vmem:[%s164 + $0x51c] sm:$0xff]
        %v582 = vld [vmem:[%s164 + $0x524] sm:$0xf]
        %v583 = vld [vmem:[%s164 + $0x528] sm:$0xff]
        %v584 = vld [vmem:[%s164 + $0x530] sm:$0xf]
        %v585 = vld [vmem:[%s164 + $0x534] sm:$0xff]
        %v586 = vld [vmem:[%s164 + $0x53c] sm:$0xf]
        %v587 = vld [vmem:[%s164 + $0x540] sm:$0xff]
        %v588 = vld [vmem:[%s164 + $0x548] sm:$0xf]
        %v589 = vld [vmem:[%s164 + $0x54c] sm:$0xff]
        %v590 = vld [vmem:[%s164 + $0x554] sm:$0xf]
        %v591 = vld [vmem:[%s164 + $0x558] sm:$0xff]
        %v592 = vld [vmem:[%s164 + $0x560] sm:$0xf]
        %v593 = vld [vmem:[%s164 + $0x564] sm:$0xff]
        %v594 = vld [vmem:[%s164 + $0x56c] sm:$0xf]
        %v595 = vld [vmem:[%s164 + $0x570] sm:$0xff]
        %v596 = vld [vmem:[%s164 + $0x578] sm:$0xf]
        %v597 = vld [vmem:[%s164 + $0x57c] sm:$0xff]
        %v598 = vld [vmem:[%s164 + $0x584] sm:$0xf]
        %v599 = vld [vmem:[%s164 + $0x588] sm:$0xff]
        %v600 = vld [vmem:[%s164 + $0x590] sm:$0xf]
        %v601 = vld [vmem:[%s164 + $0x594] sm:$0xff]
        %v602 = vld [vmem:[%s164 + $0x59c] sm:$0xf]
        %v603 = vld [vmem:[%s164 + $0x5a0] sm:$0xff]
        %v604 = vld [vmem:[%s164 + $0x5a8] sm:$0xf]
        %v605 = vld [vmem:[%s164 + $0x5ac] sm:$0xff]
        %v606 = vld [vmem:[%s164 + $0x5b4] sm:$0xf]
        %v607 = vld [vmem:[%s164 + $0x5b8] sm:$0xff]
        %v608 = vld [vmem:[%s164 + $0x5c0] sm:$0xf]
        %v609 = vld [vmem:[%s164 + $0x5c4] sm:$0xff]
        %v610 = vld [vmem:[%s164 + $0x5cc] sm:$0xf]
        %v611 = vld [vmem:[%s164 + $0x5d0] sm:$0xff]
        %v612 = vld [vmem:[%s164 + $0x5d8] sm:$0xf]
        %v613 = vld [vmem:[%s164 + $0x5dc] sm:$0xff]
        %v614 = vld [vmem:[%s164 + $0x5e4] sm:$0xf]
        %v615 = vld [vmem:[%s164 + $0x5e8] sm:$0xff]
        %v616 = vld [vmem:[%s164 + $0x5f0] sm:$0xf]
        %v617 = vld [vmem:[%s164 + $0x5f4] sm:$0xff]
        %v618 = vld [vmem:[%s164 + $0x5fc] sm:$0xf]
        %v619 = vld [vmem:[%s164 + $0x600] sm:$0xff]
        %v620 = vld [vmem:[%s164 + $0x608] sm:$0xf]
        %v621 = vld [vmem:[%s164 + $0x60c] sm:$0xff]
        %v622 = vld [vmem:[%s164 + $0x614] sm:$0xf]
        %v623 = vld [vmem:[%s164 + $0x618] sm:$0xff]
        %v624 = vld [vmem:[%s164 + $0x620] sm:$0xf]
        %v625 = vld [vmem:[%s164 + $0x624] sm:$0xff]
        %v626 = vld [vmem:[%s164 + $0x62c] sm:$0xf]
        %v627 = vld [vmem:[%s164 + $0x630] sm:$0xff]
        %v628 = vld [vmem:[%s164 + $0x638] sm:$0xf]
        %v629 = vld [vmem:[%s164 + $0x63c] sm:$0xff]
        %v630 = vld [vmem:[%s164 + $0x644] sm:$0xf]
        %v631 = vld [vmem:[%s164 + $0x648] sm:$0xff]
        %v632 = vld [vmem:[%s164 + $0x650] sm:$0xf]
        %v633 = vld [vmem:[%s164 + $0x654] sm:$0xff]
        %v634 = vld [vmem:[%s164 + $0x65c] sm:$0xf]
        %v635 = vld [vmem:[%s164 + $0x660] sm:$0xff]
        %v636 = vld [vmem:[%s164 + $0x668] sm:$0xf]
        %v637 = vld [vmem:[%s164 + $0x66c] sm:$0xff]
        %v638 = vld [vmem:[%s164 + $0x674] sm:$0xf]
        %v639 = vld [vmem:[%s164 + $0x678] sm:$0xff]
        %v640 = vld [vmem:[%s164 + $0x680] sm:$0xf]
        %v641 = vld [vmem:[%s164 + $0x684] sm:$0xff]
        %v642 = vld [vmem:[%s164 + $0x68c] sm:$0xf]
        %v643 = vld [vmem:[%s164 + $0x690] sm:$0xff]
        %v644 = vld [vmem:[%s164 + $0x698] sm:$0xf]
        %v645 = vld [vmem:[%s164 + $0x69c] sm:$0xff]
        %v646 = vld [vmem:[%s164 + $0x6a4] sm:$0xf]
        %v647 = vld [vmem:[%s164 + $0x6a8] sm:$0xff]
        %v648 = vld [vmem:[%s164 + $0x6b0] sm:$0xf]
        %v649 = vld [vmem:[%s164 + $0x6b4] sm:$0xff]
        %v650 = vld [vmem:[%s164 + $0x6bc] sm:$0xf]
        %v939 = vunpack.c.l.b16 %v363
        %v940 = vunpack.c.h.b16 %v363
        %v941 = vunpack.c.l.b16 %v364
        %v942 = vunpack.c.l.b16 %v365
        %v943 = vunpack.c.h.b16 %v365
        %v944 = vunpack.c.l.b16 %v366
        %v945 = vunpack.c.l.b16 %v367
        %v946 = vunpack.c.h.b16 %v367
        %v947 = vunpack.c.l.b16 %v368
        %v948 = vunpack.c.l.b16 %v369
        %v949 = vunpack.c.h.b16 %v369
        %v950 = vunpack.c.l.b16 %v370
        %v951 = vunpack.c.l.b16 %v371
        %v952 = vunpack.c.h.b16 %v371
        %v953 = vunpack.c.l.b16 %v372
        %v954 = vunpack.c.l.b16 %v373
        %v955 = vunpack.c.h.b16 %v373
        %v956 = vunpack.c.l.b16 %v374
        %v957 = vunpack.c.l.b16 %v375
        %v958 = vunpack.c.h.b16 %v375
        %v959 = vunpack.c.l.b16 %v376
        %v960 = vunpack.c.l.b16 %v377
        %v961 = vunpack.c.h.b16 %v377
        %v962 = vunpack.c.l.b16 %v378
        %v963 = vunpack.c.l.b16 %v379
        %v964 = vunpack.c.h.b16 %v379
        %v965 = vunpack.c.l.b16 %v380
        %v966 = vunpack.c.l.b16 %v381
        %v967 = vunpack.c.h.b16 %v381
        %v968 = vunpack.c.l.b16 %v382
        %v969 = vunpack.c.l.b16 %v383
        %v970 = vunpack.c.h.b16 %v383
        %v971 = vunpack.c.l.b16 %v384
        %v972 = vunpack.c.l.b16 %v385
        %v973 = vunpack.c.h.b16 %v385
        %v974 = vunpack.c.l.b16 %v386
        %v975 = vunpack.c.l.b16 %v387
        %v976 = vunpack.c.h.b16 %v387
        %v977 = vunpack.c.l.b16 %v388
        %v978 = vunpack.c.l.b16 %v389
        %v979 = vunpack.c.h.b16 %v389
        %v980 = vunpack.c.l.b16 %v390
        %v981 = vunpack.c.l.b16 %v391
        %v982 = vunpack.c.h.b16 %v391
        %v983 = vunpack.c.l.b16 %v392
        %v984 = vunpack.c.l.b16 %v393
        %v985 = vunpack.c.h.b16 %v393
        %v986 = vunpack.c.l.b16 %v394
        %v987 = vunpack.c.l.b16 %v395
        %v988 = vunpack.c.h.b16 %v395
        %v989 = vunpack.c.l.b16 %v396
        %v990 = vunpack.c.l.b16 %v397
        %v991 = vunpack.c.h.b16 %v397
        %v992 = vunpack.c.l.b16 %v398
        %v993 = vunpack.c.l.b16 %v399
        %v994 = vunpack.c.h.b16 %v399
        %v995 = vunpack.c.l.b16 %v400
        %v996 = vunpack.c.l.b16 %v401
        %v997 = vunpack.c.h.b16 %v401
        %v998 = vunpack.c.l.b16 %v402
        %v999 = vunpack.c.l.b16 %v403
        %v1000 = vunpack.c.h.b16 %v403
        %v1001 = vunpack.c.l.b16 %v404
        %v1002 = vunpack.c.l.b16 %v405
        %v1003 = vunpack.c.h.b16 %v405
        %v1004 = vunpack.c.l.b16 %v406
        %v1005 = vunpack.c.l.b16 %v407
        %v1006 = vunpack.c.h.b16 %v407
        %v1007 = vunpack.c.l.b16 %v408
        %v1008 = vunpack.c.l.b16 %v409
        %v1009 = vunpack.c.h.b16 %v409
        %v1010 = vunpack.c.l.b16 %v410
        %v1011 = vunpack.c.l.b16 %v411
        %v1012 = vunpack.c.h.b16 %v411
        %v1013 = vunpack.c.l.b16 %v412
        %v1014 = vunpack.c.l.b16 %v413
        %v1015 = vunpack.c.h.b16 %v413
        %v1016 = vunpack.c.l.b16 %v414
        %v1017 = vunpack.c.l.b16 %v415
        %v1018 = vunpack.c.h.b16 %v415
        %v1019 = vunpack.c.l.b16 %v416
        %v1020 = vunpack.c.l.b16 %v417
        %v1021 = vunpack.c.h.b16 %v417
        %v1022 = vunpack.c.l.b16 %v418
        %v1023 = vunpack.c.l.b16 %v419
        %v1024 = vunpack.c.h.b16 %v419
        %v1025 = vunpack.c.l.b16 %v420
        %v1026 = vunpack.c.l.b16 %v421
        %v1027 = vunpack.c.h.b16 %v421
        %v1028 = vunpack.c.l.b16 %v422
        %v1029 = vunpack.c.l.b16 %v423
        %v1030 = vunpack.c.h.b16 %v423
        %v1031 = vunpack.c.l.b16 %v424
        %v1032 = vunpack.c.l.b16 %v425
        %v1033 = vunpack.c.h.b16 %v425
        %v1034 = vunpack.c.l.b16 %v426
        %v1035 = vunpack.c.l.b16 %v427
        %v1036 = vunpack.c.h.b16 %v427
        %v1037 = vunpack.c.l.b16 %v428
        %v1038 = vunpack.c.l.b16 %v429
        %v1039 = vunpack.c.h.b16 %v429
        %v1040 = vunpack.c.l.b16 %v430
        %v1041 = vunpack.c.l.b16 %v431
        %v1042 = vunpack.c.h.b16 %v431
        %v1043 = vunpack.c.l.b16 %v432
        %v1044 = vunpack.c.l.b16 %v433
        %v1045 = vunpack.c.h.b16 %v433
        %v1046 = vunpack.c.l.b16 %v434
        %v1047 = vunpack.c.l.b16 %v435
        %v1048 = vunpack.c.h.b16 %v435
        %v1049 = vunpack.c.l.b16 %v436
        %v1050 = vunpack.c.l.b16 %v437
        %v1051 = vunpack.c.h.b16 %v437
        %v1052 = vunpack.c.l.b16 %v438
        %v1053 = vunpack.c.l.b16 %v439
        %v1054 = vunpack.c.h.b16 %v439
        %v1055 = vunpack.c.l.b16 %v440
        %v1056 = vunpack.c.l.b16 %v441
        %v1057 = vunpack.c.h.b16 %v441
        %v1058 = vunpack.c.l.b16 %v442
        %v1059 = vunpack.c.l.b16 %v443
        %v1060 = vunpack.c.h.b16 %v443
        %v1061 = vunpack.c.l.b16 %v444
        %v1062 = vunpack.c.l.b16 %v445
        %v1063 = vunpack.c.h.b16 %v445
        %v1064 = vunpack.c.l.b16 %v446
        %v1065 = vunpack.c.l.b16 %v447
        %v1066 = vunpack.c.h.b16 %v447
        %v1067 = vunpack.c.l.b16 %v448
        %v1068 = vunpack.c.l.b16 %v449
        %v1069 = vunpack.c.h.b16 %v449
        %v1070 = vunpack.c.l.b16 %v450
        %v1071 = vunpack.c.l.b16 %v451
        %v1072 = vunpack.c.h.b16 %v451
        %v1073 = vunpack.c.l.b16 %v452
        %v1074 = vunpack.c.l.b16 %v453
        %v1075 = vunpack.c.h.b16 %v453
        %v1076 = vunpack.c.l.b16 %v454
        %v1077 = vunpack.c.l.b16 %v455
        %v1078 = vunpack.c.h.b16 %v455
        %v1079 = vunpack.c.l.b16 %v456
        %v1080 = vunpack.c.l.b16 %v457
        %v1081 = vunpack.c.h.b16 %v457
        %v1082 = vunpack.c.l.b16 %v458
        %v1083 = vunpack.c.l.b16 %v459
        %v1084 = vunpack.c.h.b16 %v459
        %v1085 = vunpack.c.l.b16 %v460
        %v1086 = vunpack.c.l.b16 %v461
        %v1087 = vunpack.c.h.b16 %v461
        %v1088 = vunpack.c.l.b16 %v462
        %v1089 = vunpack.c.l.b16 %v463
        %v1090 = vunpack.c.h.b16 %v463
        %v1091 = vunpack.c.l.b16 %v464
        %v1092 = vunpack.c.l.b16 %v465
        %v1093 = vunpack.c.h.b16 %v465
        %v1094 = vunpack.c.l.b16 %v466
        %v1095 = vunpack.c.l.b16 %v467
        %v1096 = vunpack.c.h.b16 %v467
        %v1097 = vunpack.c.l.b16 %v468
        %v1098 = vunpack.c.l.b16 %v469
        %v1099 = vunpack.c.h.b16 %v469
        %v1100 = vunpack.c.l.b16 %v470
        %v1101 = vunpack.c.l.b16 %v471
        %v1102 = vunpack.c.h.b16 %v471
        %v1103 = vunpack.c.l.b16 %v472
        %v1104 = vunpack.c.l.b16 %v473
        %v1105 = vunpack.c.h.b16 %v473
        %v1106 = vunpack.c.l.b16 %v474
        %v1107 = vunpack.c.l.b16 %v475
        %v1108 = vunpack.c.h.b16 %v475
        %v1109 = vunpack.c.l.b16 %v476
        %v1110 = vunpack.c.l.b16 %v477
        %v1111 = vunpack.c.h.b16 %v477
        %v1112 = vunpack.c.l.b16 %v478
        %v1113 = vunpack.c.l.b16 %v479
        %v1114 = vunpack.c.h.b16 %v479
        %v1115 = vunpack.c.l.b16 %v480
        %v1116 = vunpack.c.l.b16 %v481
        %v1117 = vunpack.c.h.b16 %v481
        %v1118 = vunpack.c.l.b16 %v482
        %v1119 = vunpack.c.l.b16 %v483
        %v1120 = vunpack.c.h.b16 %v483
        %v1121 = vunpack.c.l.b16 %v484
        %v1122 = vunpack.c.l.b16 %v485
        %v1123 = vunpack.c.h.b16 %v485
        %v1124 = vunpack.c.l.b16 %v486
        %v1125 = vunpack.c.l.b16 %v487
        %v1126 = vunpack.c.h.b16 %v487
        %v1127 = vunpack.c.l.b16 %v488
        %v1128 = vunpack.c.l.b16 %v489
        %v1129 = vunpack.c.h.b16 %v489
        %v1130 = vunpack.c.l.b16 %v490
        %v1131 = vunpack.c.l.b16 %v491
        %v1132 = vunpack.c.h.b16 %v491
        %v1133 = vunpack.c.l.b16 %v492
        %v1134 = vunpack.c.l.b16 %v493
        %v1135 = vunpack.c.h.b16 %v493
        %v1136 = vunpack.c.l.b16 %v494
        %v1137 = vunpack.c.l.b16 %v495
        %v1138 = vunpack.c.h.b16 %v495
        %v1139 = vunpack.c.l.b16 %v496
        %v1140 = vunpack.c.l.b16 %v497
        %v1141 = vunpack.c.h.b16 %v497
        %v1142 = vunpack.c.l.b16 %v498
        %v1143 = vunpack.c.l.b16 %v499
        %v1144 = vunpack.c.h.b16 %v499
        %v1145 = vunpack.c.l.b16 %v500
        %v1146 = vunpack.c.l.b16 %v501
        %v1147 = vunpack.c.h.b16 %v501
        %v1148 = vunpack.c.l.b16 %v502
        %v1149 = vunpack.c.l.b16 %v503
        %v1150 = vunpack.c.h.b16 %v503
        %v1151 = vunpack.c.l.b16 %v504
        %v1152 = vunpack.c.l.b16 %v505
        %v1153 = vunpack.c.h.b16 %v505
        %v1154 = vunpack.c.l.b16 %v506
        %v1155 = vunpack.c.l.b16 %v507
        %v1156 = vunpack.c.h.b16 %v507
        %v1157 = vunpack.c.l.b16 %v508
        %v1158 = vunpack.c.l.b16 %v509
        %v1159 = vunpack.c.h.b16 %v509
        %v1160 = vunpack.c.l.b16 %v510
        %v1161 = vunpack.c.l.b16 %v511
        %v1162 = vunpack.c.h.b16 %v511
        %v1163 = vunpack.c.l.b16 %v512
        %v1164 = vunpack.c.l.b16 %v513
        %v1165 = vunpack.c.h.b16 %v513
        %v1166 = vunpack.c.l.b16 %v514
        %v1167 = vunpack.c.l.b16 %v515
        %v1168 = vunpack.c.h.b16 %v515
        %v1169 = vunpack.c.l.b16 %v516
        %v1170 = vunpack.c.l.b16 %v517
        %v1171 = vunpack.c.h.b16 %v517
        %v1172 = vunpack.c.l.b16 %v518
        %v1173 = vunpack.c.l.b16 %v519
        %v1174 = vunpack.c.h.b16 %v519
        %v1175 = vunpack.c.l.b16 %v520
        %v1176 = vunpack.c.l.b16 %v521
        %v1177 = vunpack.c.h.b16 %v521
        %v1178 = vunpack.c.l.b16 %v522
        %v1179 = vunpack.c.l.b16 %v523
        %v1180 = vunpack.c.h.b16 %v523
        %v1181 = vunpack.c.l.b16 %v524
        %v1182 = vunpack.c.l.b16 %v525
        %v1183 = vunpack.c.h.b16 %v525
        %v1184 = vunpack.c.l.b16 %v526
        %v1185 = vunpack.c.l.b16 %v527
        %v1186 = vunpack.c.h.b16 %v527
        %v1187 = vunpack.c.l.b16 %v528
        %v1188 = vunpack.c.l.b16 %v529
        %v1189 = vunpack.c.h.b16 %v529
        %v1190 = vunpack.c.l.b16 %v530
        %v1191 = vunpack.c.l.b16 %v531
        %v1192 = vunpack.c.h.b16 %v531
        %v1193 = vunpack.c.l.b16 %v532
        %v1194 = vunpack.c.l.b16 %v533
        %v1195 = vunpack.c.h.b16 %v533
        %v1196 = vunpack.c.l.b16 %v534
        %v1197 = vunpack.c.l.b16 %v535
        %v1198 = vunpack.c.h.b16 %v535
        %v1199 = vunpack.c.l.b16 %v536
        %v1200 = vunpack.c.l.b16 %v537
        %v1201 = vunpack.c.h.b16 %v537
        %v1202 = vunpack.c.l.b16 %v538
        %v1203 = vunpack.c.l.b16 %v539
        %v1204 = vunpack.c.h.b16 %v539
        %v1205 = vunpack.c.l.b16 %v540
        %v1206 = vunpack.c.l.b16 %v541
        %v1207 = vunpack.c.h.b16 %v541
        %v1208 = vunpack.c.l.b16 %v542
        %v1209 = vunpack.c.l.b16 %v543
        %v1210 = vunpack.c.h.b16 %v543
        %v1211 = vunpack.c.l.b16 %v544
        %v1212 = vunpack.c.l.b16 %v545
        %v1213 = vunpack.c.h.b16 %v545
        %v1214 = vunpack.c.l.b16 %v546
        %v1215 = vunpack.c.l.b16 %v547
        %v1216 = vunpack.c.h.b16 %v547
        %v1217 = vunpack.c.l.b16 %v548
        %v1218 = vunpack.c.l.b16 %v549
        %v1219 = vunpack.c.h.b16 %v549
        %v1220 = vunpack.c.l.b16 %v550
        %v1221 = vunpack.c.l.b16 %v551
        %v1222 = vunpack.c.h.b16 %v551
        %v1223 = vunpack.c.l.b16 %v552
        %v1224 = vunpack.c.l.b16 %v553
        %v1225 = vunpack.c.h.b16 %v553
        %v1226 = vunpack.c.l.b16 %v554
        %v1227 = vunpack.c.l.b16 %v555
        %v1228 = vunpack.c.h.b16 %v555
        %v1229 = vunpack.c.l.b16 %v556
        %v1230 = vunpack.c.l.b16 %v557
        %v1231 = vunpack.c.h.b16 %v557
        %v1232 = vunpack.c.l.b16 %v558
        %v1233 = vunpack.c.l.b16 %v559
        %v1234 = vunpack.c.h.b16 %v559
        %v1235 = vunpack.c.l.b16 %v560
        %v1236 = vunpack.c.l.b16 %v561
        %v1237 = vunpack.c.h.b16 %v561
        %v1238 = vunpack.c.l.b16 %v562
        %v1239 = vunpack.c.l.b16 %v563
        %v1240 = vunpack.c.h.b16 %v563
        %v1241 = vunpack.c.l.b16 %v564
        %v1242 = vunpack.c.l.b16 %v565
        %v1243 = vunpack.c.h.b16 %v565
        %v1244 = vunpack.c.l.b16 %v566
        %v1245 = vunpack.c.l.b16 %v567
        %v1246 = vunpack.c.h.b16 %v567
        %v1247 = vunpack.c.l.b16 %v568
        %v1248 = vunpack.c.l.b16 %v569
        %v1249 = vunpack.c.h.b16 %v569
        %v1250 = vunpack.c.l.b16 %v570
        %v1251 = vunpack.c.l.b16 %v571
        %v1252 = vunpack.c.h.b16 %v571
        %v1253 = vunpack.c.l.b16 %v572
        %v1254 = vunpack.c.l.b16 %v573
        %v1255 = vunpack.c.h.b16 %v573
        %v1256 = vunpack.c.l.b16 %v574
        %v1257 = vunpack.c.l.b16 %v575
        %v1258 = vunpack.c.h.b16 %v575
        %v1259 = vunpack.c.l.b16 %v576
        %v1260 = vunpack.c.l.b16 %v577
        %v1261 = vunpack.c.h.b16 %v577
        %v1262 = vunpack.c.l.b16 %v578
        %v1263 = vunpack.c.l.b16 %v579
        %v1264 = vunpack.c.h.b16 %v579
        %v1265 = vunpack.c.l.b16 %v580
        %v1266 = vunpack.c.l.b16 %v581
        %v1267 = vunpack.c.h.b16 %v581
        %v1268 = vunpack.c.l.b16 %v582
        %v1269 = vunpack.c.l.b16 %v583
        %v1270 = vunpack.c.h.b16 %v583
        %v1271 = vunpack.c.l.b16 %v584
        %v1272 = vunpack.c.l.b16 %v585
        %v1273 = vunpack.c.h.b16 %v585
        %v1274 = vunpack.c.l.b16 %v586
        %v1275 = vunpack.c.l.b16 %v587
        %v1276 = vunpack.c.h.b16 %v587
        %v1277 = vunpack.c.l.b16 %v588
        %v1278 = vunpack.c.l.b16 %v589
        %v1279 = vunpack.c.h.b16 %v589
        %v1280 = vunpack.c.l.b16 %v590
        %v1281 = vunpack.c.l.b16 %v591
        %v1282 = vunpack.c.h.b16 %v591
        %v1283 = vunpack.c.l.b16 %v592
        %v1284 = vunpack.c.l.b16 %v593
        %v1285 = vunpack.c.h.b16 %v593
        %v1286 = vunpack.c.l.b16 %v594
        %v1287 = vunpack.c.l.b16 %v595
        %v1288 = vunpack.c.h.b16 %v595
        %v1289 = vunpack.c.l.b16 %v596
        %v1290 = vunpack.c.l.b16 %v597
        %v1291 = vunpack.c.h.b16 %v597
        %v1292 = vunpack.c.l.b16 %v598
        %v1293 = vunpack.c.l.b16 %v599
        %v1294 = vunpack.c.h.b16 %v599
        %v1295 = vunpack.c.l.b16 %v600
        %v1296 = vunpack.c.l.b16 %v601
        %v1297 = vunpack.c.h.b16 %v601
        %v1298 = vunpack.c.l.b16 %v602
        %v1299 = vunpack.c.l.b16 %v603
        %v1300 = vunpack.c.h.b16 %v603
        %v1301 = vunpack.c.l.b16 %v604
        %v1302 = vunpack.c.l.b16 %v605
        %v1303 = vunpack.c.h.b16 %v605
        %v1304 = vunpack.c.l.b16 %v606
        %v1305 = vunpack.c.l.b16 %v607
        %v1306 = vunpack.c.h.b16 %v607
        %v1307 = vunpack.c.l.b16 %v608
        %v1308 = vunpack.c.l.b16 %v609
        %v1309 = vunpack.c.h.b16 %v609
        %v1310 = vunpack.c.l.b16 %v610
        %v1311 = vunpack.c.l.b16 %v611
        %v1312 = vunpack.c.h.b16 %v611
        %v1313 = vunpack.c.l.b16 %v612
        %v1314 = vunpack.c.l.b16 %v613
        %v1315 = vunpack.c.h.b16 %v613
        %v1316 = vunpack.c.l.b16 %v614
        %v1317 = vunpack.c.l.b16 %v615
        %v1318 = vunpack.c.h.b16 %v615
        %v1319 = vunpack.c.l.b16 %v616
        %v1320 = vunpack.c.l.b16 %v617
        %v1321 = vunpack.c.h.b16 %v617
        %v1322 = vunpack.c.l.b16 %v618
        %v1323 = vunpack.c.l.b16 %v619
        %v1324 = vunpack.c.h.b16 %v619
        %v1325 = vunpack.c.l.b16 %v620
        %v1326 = vunpack.c.l.b16 %v621
        %v1327 = vunpack.c.h.b16 %v621
        %v1328 = vunpack.c.l.b16 %v622
        %v1329 = vunpack.c.l.b16 %v623
        %v1330 = vunpack.c.h.b16 %v623
        %v1331 = vunpack.c.l.b16 %v624
        %v1332 = vunpack.c.l.b16 %v625
        %v1333 = vunpack.c.h.b16 %v625
        %v1334 = vunpack.c.l.b16 %v626
        %v1335 = vunpack.c.l.b16 %v627
        %v1336 = vunpack.c.h.b16 %v627
        %v1337 = vunpack.c.l.b16 %v628
        %v1338 = vunpack.c.l.b16 %v629
        %v1339 = vunpack.c.h.b16 %v629
        %v1340 = vunpack.c.l.b16 %v630
        %v1341 = vunpack.c.l.b16 %v631
        %v1342 = vunpack.c.h.b16 %v631
        %v1343 = vunpack.c.l.b16 %v632
        %v1344 = vunpack.c.l.b16 %v633
        %v1345 = vunpack.c.h.b16 %v633
        %v1346 = vunpack.c.l.b16 %v634
        %v1347 = vunpack.c.l.b16 %v635
        %v1348 = vunpack.c.h.b16 %v635
        %v1349 = vunpack.c.l.b16 %v636
        %v1350 = vunpack.c.l.b16 %v637
        %v1351 = vunpack.c.h.b16 %v637
        %v1352 = vunpack.c.l.b16 %v638
        %v1353 = vunpack.c.l.b16 %v639
        %v1354 = vunpack.c.h.b16 %v639
        %v1355 = vunpack.c.l.b16 %v640
        %v1356 = vunpack.c.l.b16 %v641
        %v1357 = vunpack.c.h.b16 %v641
        %v1358 = vunpack.c.l.b16 %v642
        %v1359 = vunpack.c.l.b16 %v643
        %v1360 = vunpack.c.h.b16 %v643
        %v1361 = vunpack.c.l.b16 %v644
        %v1362 = vunpack.c.l.b16 %v645
        %v1363 = vunpack.c.h.b16 %v645
        %v1364 = vunpack.c.l.b16 %v646
        %v1365 = vunpack.c.l.b16 %v647
        %v1366 = vunpack.c.h.b16 %v647
        %v1367 = vunpack.c.l.b16 %v648
        %v1368 = vunpack.c.l.b16 %v649
        %v1369 = vunpack.c.h.b16 %v649
        %v1370 = vunpack.c.l.b16 %v650
        %v1371 = vpack.c.b16 %v942, %v939
        %v1372 = vpack.c.b16 %v943, %v940
        %v1373 = vpack.c.b16 %v944, %v941
        %v1374 = vpack.c.b16 %v948, %v945
        %v1375 = vpack.c.b16 %v949, %v946
        %v1376 = vpack.c.b16 %v950, %v947
        %v1377 = vpack.c.b16 %v954, %v951
        %v1378 = vpack.c.b16 %v955, %v952
        %v1379 = vpack.c.b16 %v956, %v953
        %v1380 = vpack.c.b16 %v960, %v957
        %v1381 = vpack.c.b16 %v961, %v958
        %v1382 = vpack.c.b16 %v962, %v959
        %v1383 = vpack.c.b16 %v966, %v963
        %v1384 = vpack.c.b16 %v967, %v964
        %v1385 = vpack.c.b16 %v968, %v965
        %v1386 = vpack.c.b16 %v972, %v969
        %v1387 = vpack.c.b16 %v973, %v970
        %v1388 = vpack.c.b16 %v974, %v971
        %v1389 = vpack.c.b16 %v978, %v975
        %v1390 = vpack.c.b16 %v979, %v976
        %v1391 = vpack.c.b16 %v980, %v977
        %v1392 = vpack.c.b16 %v984, %v981
        %v1393 = vpack.c.b16 %v985, %v982
        %v1394 = vpack.c.b16 %v986, %v983
        %v1395 = vpack.c.b16 %v990, %v987
        %v1396 = vpack.c.b16 %v991, %v988
        %v1397 = vpack.c.b16 %v992, %v989
        %v1398 = vpack.c.b16 %v996, %v993
        %v1399 = vpack.c.b16 %v997, %v994
        %v1400 = vpack.c.b16 %v998, %v995
        %v1401 = vpack.c.b16 %v1002, %v999
        %v1402 = vpack.c.b16 %v1003, %v1000
        %v1403 = vpack.c.b16 %v1004, %v1001
        %v1404 = vpack.c.b16 %v1008, %v1005
        %v1405 = vpack.c.b16 %v1009, %v1006
        %v1406 = vpack.c.b16 %v1010, %v1007
        %v1407 = vpack.c.b16 %v1014, %v1011
        %v1408 = vpack.c.b16 %v1015, %v1012
        %v1409 = vpack.c.b16 %v1016, %v1013
        %v1410 = vpack.c.b16 %v1020, %v1017
        %v1411 = vpack.c.b16 %v1021, %v1018
        %v1412 = vpack.c.b16 %v1022, %v1019
        %v1413 = vpack.c.b16 %v1026, %v1023
        %v1414 = vpack.c.b16 %v1027, %v1024
        %v1415 = vpack.c.b16 %v1028, %v1025
        %v1416 = vpack.c.b16 %v1032, %v1029
        %v1417 = vpack.c.b16 %v1033, %v1030
        %v1418 = vpack.c.b16 %v1034, %v1031
        %v1419 = vpack.c.b16 %v1038, %v1035
        %v1420 = vpack.c.b16 %v1039, %v1036
        %v1421 = vpack.c.b16 %v1040, %v1037
        %v1422 = vpack.c.b16 %v1044, %v1041
        %v1423 = vpack.c.b16 %v1045, %v1042
        %v1424 = vpack.c.b16 %v1046, %v1043
        %v1425 = vpack.c.b16 %v1050, %v1047
        %v1426 = vpack.c.b16 %v1051, %v1048
        %v1427 = vpack.c.b16 %v1052, %v1049
        %v1428 = vpack.c.b16 %v1056, %v1053
        %v1429 = vpack.c.b16 %v1057, %v1054
        %v1430 = vpack.c.b16 %v1058, %v1055
        %v1431 = vpack.c.b16 %v1062, %v1059
        %v1432 = vpack.c.b16 %v1063, %v1060
        %v1433 = vpack.c.b16 %v1064, %v1061
        %v1434 = vpack.c.b16 %v1068, %v1065
        %v1435 = vpack.c.b16 %v1069, %v1066
        %v1436 = vpack.c.b16 %v1070, %v1067
        %v1437 = vpack.c.b16 %v1074, %v1071
        %v1438 = vpack.c.b16 %v1075, %v1072
        %v1439 = vpack.c.b16 %v1076, %v1073
        %v1440 = vpack.c.b16 %v1080, %v1077
        %v1441 = vpack.c.b16 %v1081, %v1078
        %v1442 = vpack.c.b16 %v1082, %v1079
        %v1443 = vpack.c.b16 %v1086, %v1083
        %v1444 = vpack.c.b16 %v1087, %v1084
        %v1445 = vpack.c.b16 %v1088, %v1085
        %v1446 = vpack.c.b16 %v1092, %v1089
        %v1447 = vpack.c.b16 %v1093, %v1090
        %v1448 = vpack.c.b16 %v1094, %v1091
        %v1449 = vpack.c.b16 %v1098, %v1095
        %v1450 = vpack.c.b16 %v1099, %v1096
        %v1451 = vpack.c.b16 %v1100, %v1097
        %v1452 = vpack.c.b16 %v1104, %v1101
        %v1453 = vpack.c.b16 %v1105, %v1102
        %v1454 = vpack.c.b16 %v1106, %v1103
        %v1455 = vpack.c.b16 %v1110, %v1107
        %v1456 = vpack.c.b16 %v1111, %v1108
        %v1457 = vpack.c.b16 %v1112, %v1109
        %v1458 = vpack.c.b16 %v1116, %v1113
        %v1459 = vpack.c.b16 %v1117, %v1114
        %v1460 = vpack.c.b16 %v1118, %v1115
        %v1461 = vpack.c.b16 %v1122, %v1119
        %v1462 = vpack.c.b16 %v1123, %v1120
        %v1463 = vpack.c.b16 %v1124, %v1121
        %v1464 = vpack.c.b16 %v1128, %v1125
        %v1465 = vpack.c.b16 %v1129, %v1126
        %v1466 = vpack.c.b16 %v1130, %v1127
        %v1467 = vpack.c.b16 %v1134, %v1131
        %v1468 = vpack.c.b16 %v1135, %v1132
        %v1469 = vpack.c.b16 %v1136, %v1133
        %v1470 = vpack.c.b16 %v1140, %v1137
        %v1471 = vpack.c.b16 %v1141, %v1138
        %v1472 = vpack.c.b16 %v1142, %v1139
        %v1473 = vpack.c.b16 %v1146, %v1143
        %v1474 = vpack.c.b16 %v1147, %v1144
        %v1475 = vpack.c.b16 %v1148, %v1145
        %v1476 = vpack.c.b16 %v1152, %v1149
        %v1477 = vpack.c.b16 %v1153, %v1150
        %v1478 = vpack.c.b16 %v1154, %v1151
        %v1479 = vpack.c.b16 %v1158, %v1155
        %v1480 = vpack.c.b16 %v1159, %v1156
        %v1481 = vpack.c.b16 %v1160, %v1157
        %v1482 = vpack.c.b16 %v1164, %v1161
        %v1483 = vpack.c.b16 %v1165, %v1162
        %v1484 = vpack.c.b16 %v1166, %v1163
        %v1485 = vpack.c.b16 %v1170, %v1167
        %v1486 = vpack.c.b16 %v1171, %v1168
        %v1487 = vpack.c.b16 %v1172, %v1169
        %v1488 = vpack.c.b16 %v1176, %v1173
        %v1489 = vpack.c.b16 %v1177, %v1174
        %v1490 = vpack.c.b16 %v1178, %v1175
        %v1491 = vpack.c.b16 %v1182, %v1179
        %v1492 = vpack.c.b16 %v1183, %v1180
        %v1493 = vpack.c.b16 %v1184, %v1181
        %v1494 = vpack.c.b16 %v1188, %v1185
        %v1495 = vpack.c.b16 %v1189, %v1186
        %v1496 = vpack.c.b16 %v1190, %v1187
        %v1497 = vpack.c.b16 %v1194, %v1191
        %v1498 = vpack.c.b16 %v1195, %v1192
        %v1499 = vpack.c.b16 %v1196, %v1193
        %v1500 = vpack.c.b16 %v1200, %v1197
        %v1501 = vpack.c.b16 %v1201, %v1198
        %v1502 = vpack.c.b16 %v1202, %v1199
        %v1503 = vpack.c.b16 %v1206, %v1203
        %v1504 = vpack.c.b16 %v1207, %v1204
        %v1505 = vpack.c.b16 %v1208, %v1205
        %v1506 = vpack.c.b16 %v1212, %v1209
        %v1507 = vpack.c.b16 %v1213, %v1210
        %v1508 = vpack.c.b16 %v1214, %v1211
        %v1509 = vpack.c.b16 %v1218, %v1215
        %v1510 = vpack.c.b16 %v1219, %v1216
        %v1511 = vpack.c.b16 %v1220, %v1217
        %v1512 = vpack.c.b16 %v1224, %v1221
        %v1513 = vpack.c.b16 %v1225, %v1222
        %v1514 = vpack.c.b16 %v1226, %v1223
        %v1515 = vpack.c.b16 %v1230, %v1227
        %v1516 = vpack.c.b16 %v1231, %v1228
        %v1517 = vpack.c.b16 %v1232, %v1229
        %v1518 = vpack.c.b16 %v1236, %v1233
        %v1519 = vpack.c.b16 %v1237, %v1234
        %v1520 = vpack.c.b16 %v1238, %v1235
        %v1521 = vpack.c.b16 %v1242, %v1239
        %v1522 = vpack.c.b16 %v1243, %v1240
        %v1523 = vpack.c.b16 %v1244, %v1241
        %v1524 = vpack.c.b16 %v1248, %v1245
        %v1525 = vpack.c.b16 %v1249, %v1246
        %v1526 = vpack.c.b16 %v1250, %v1247
        %v1527 = vpack.c.b16 %v1254, %v1251
        %v1528 = vpack.c.b16 %v1255, %v1252
        %v1529 = vpack.c.b16 %v1256, %v1253
        %v1530 = vpack.c.b16 %v1260, %v1257
        %v1531 = vpack.c.b16 %v1261, %v1258
        %v1532 = vpack.c.b16 %v1262, %v1259
        %v1533 = vpack.c.b16 %v1266, %v1263
        %v1534 = vpack.c.b16 %v1267, %v1264
        %v1535 = vpack.c.b16 %v1268, %v1265
        %v1536 = vpack.c.b16 %v1272, %v1269
        %v1537 = vpack.c.b16 %v1273, %v1270
        %v1538 = vpack.c.b16 %v1274, %v1271
        %v1539 = vpack.c.b16 %v1278, %v1275
        %v1540 = vpack.c.b16 %v1279, %v1276
        %v1541 = vpack.c.b16 %v1280, %v1277
        %v1542 = vpack.c.b16 %v1284, %v1281
        %v1543 = vpack.c.b16 %v1285, %v1282
        %v1544 = vpack.c.b16 %v1286, %v1283
        %v1545 = vpack.c.b16 %v1290, %v1287
        %v1546 = vpack.c.b16 %v1291, %v1288
        %v1547 = vpack.c.b16 %v1292, %v1289
        %v1548 = vpack.c.b16 %v1296, %v1293
        %v1549 = vpack.c.b16 %v1297, %v1294
        %v1550 = vpack.c.b16 %v1298, %v1295
        %v1551 = vpack.c.b16 %v1302, %v1299
        %v1552 = vpack.c.b16 %v1303, %v1300
        %v1553 = vpack.c.b16 %v1304, %v1301
        %v1554 = vpack.c.b16 %v1308, %v1305
        %v1555 = vpack.c.b16 %v1309, %v1306
        %v1556 = vpack.c.b16 %v1310, %v1307
        %v1557 = vpack.c.b16 %v1314, %v1311
        %v1558 = vpack.c.b16 %v1315, %v1312
        %v1559 = vpack.c.b16 %v1316, %v1313
        %v1560 = vpack.c.b16 %v1320, %v1317
        %v1561 = vpack.c.b16 %v1321, %v1318
        %v1562 = vpack.c.b16 %v1322, %v1319
        %v1563 = vpack.c.b16 %v1326, %v1323
        %v1564 = vpack.c.b16 %v1327, %v1324
        %v1565 = vpack.c.b16 %v1328, %v1325
        %v1566 = vpack.c.b16 %v1332, %v1329
        %v1567 = vpack.c.b16 %v1333, %v1330
        %v1568 = vpack.c.b16 %v1334, %v1331
        %v1569 = vpack.c.b16 %v1338, %v1335
        %v1570 = vpack.c.b16 %v1339, %v1336
        %v1571 = vpack.c.b16 %v1340, %v1337
        %v1572 = vpack.c.b16 %v1344, %v1341
        %v1573 = vpack.c.b16 %v1345, %v1342
        %v1574 = vpack.c.b16 %v1346, %v1343
        %v1575 = vpack.c.b16 %v1350, %v1347
        %v1576 = vpack.c.b16 %v1351, %v1348
        %v1577 = vpack.c.b16 %v1352, %v1349
        %v1578 = vpack.c.b16 %v1356, %v1353
        %v1579 = vpack.c.b16 %v1357, %v1354
        %v1580 = vpack.c.b16 %v1358, %v1355
        %v1581 = vpack.c.b16 %v1362, %v1359
        %v1582 = vpack.c.b16 %v1363, %v1360
        %v1583 = vpack.c.b16 %v1364, %v1361
        %v1584 = vpack.c.b16 %v1368, %v1365
        %v1585 = vpack.c.b16 %v1369, %v1366
        %v1586 = vpack.c.b16 %v1370, %v1367
        %1803 = vmatprep.subr.bf16.mxu0 0
        %1804 = vmatpush1.bf16.msra.mxu0 %v339
        %1805 = vmatprep.subr.bf16.mxu0 0
        %1806 = vmatpush1.bf16.msra.mxu0 %v340
        %1807 = vmatprep.subr.bf16.mxu0 0
        %1808 = vmatpush1.bf16.msra.mxu0 %v341
        %1809 = vmatprep.subr.bf16.mxu0 0
        %1810 = vmatpush1.bf16.msra.mxu0 %v342
        %1811 = vmatprep.subr.bf16.mxu0 0
        %1812 = vmatpush1.bf16.msra.mxu0 %v343
        %1813 = vmatprep.subr.bf16.mxu0 0
        %1814 = vmatpush1.bf16.msra.mxu0 %v344
        %1815 = vmatprep.subr.bf16.mxu0 0
        %1816 = vmatpush1.bf16.msra.mxu0 %v345
        %1817 = vmatprep.subr.bf16.mxu0 0
        %1818 = vmatpush1.bf16.msra.mxu0 %v346
        %1819 = vmatprep.subr.bf16.mxu0 0
        %1820 = vmatpush1.bf16.msra.mxu0 %v347
        %1821 = vmatprep.subr.bf16.mxu0 0
        %1822 = vmatpush1.bf16.msra.mxu0 %v348
        %1823 = vmatprep.subr.bf16.mxu0 0
        %1824 = vmatpush1.bf16.msra.mxu0 %v349
        %1825 = vmatprep.subr.bf16.mxu0 0
        %1826 = vmatpush1.bf16.msra.mxu0 %v350
        %1827 = vmatprep.subr.bf16.mxu0 0
        %1828 = vmatpush1.bf16.msra.mxu0 %v351
        %1829 = vmatprep.subr.bf16.mxu0 0
        %1830 = vmatpush1.bf16.msra.mxu0 %v352
        %1831 = vmatprep.subr.bf16.mxu0 0
        %1832 = vmatpush1.bf16.msra.mxu0 %v353
        %1833 = vmatprep.subr.bf16.mxu0 0
        %1834 = vmatpush1.bf16.msra.mxu0 %v354
        %1835 = vmatprep.mubr.bf16.mxu0 %v1372
        %1836 = vmatmul.mubr.bf16.gmra.mrb[0].mxu0 %v1371
        %v1837 = vpop.f32.mrb[0].mxu0
        %v1838 = vadd.f32 0.0, %v1837
        %v1839 = vpop.f32.mrb[0].mxu0
        %v1840 = vpop.f32.mrb[0].mxu0
        %v1841 = vadd.f32 0.0, %v1840
        %v1842 = vpop.f32.mrb[0].mxu0
        %1843 = vmatprep.mubr.bf16.mxu0 %v1375
        %1844 = vmatmul.mubr.bf16.gmra.mrb[0].mxu0 %v1374
        %v1845 = vpop.f32.mrb[0].mxu0
        %v1846 = vadd.f32 0.0, %v1845
        %v1847 = vpop.f32.mrb[0].mxu0
        %v1848 = vpop.f32.mrb[0].mxu0
        %v1849 = vadd.f32 0.0, %v1848
        %v1850 = vpop.f32.mrb[0].mxu0
        %1851 = vmatprep.mubr.bf16.mxu0 %v1378
        %1852 = vmatmul.mubr.bf16.gmra.mrb[0].mxu0 %v1377
        %v1853 = vpop.f32.mrb[0].mxu0
        %v1854 = vadd.f32 0.0, %v1853
        %v1855 = vpop.f32.mrb[0].mxu0
        %v1856 = vpop.f32.mrb[0].mxu0
        %v1857 = vadd.f32 0.0, %v1856
        %v1858 = vpop.f32.mrb[0].mxu0
        %1859 = vmatprep.mubr.bf16.mxu0 %v1381
        %1860 = vmatmul.mubr.bf16.gmra.mrb[0].mxu0 %v1380
        %v1861 = vpop.f32.mrb[0].mxu0
        %v1862 = vadd.f32 0.0, %v1861
        %v1863 = vpop.f32.mrb[0].mxu0
        %v1864 = vpop.f32.mrb[0].mxu0
        %v1865 = vadd.f32 0.0, %v1864
        %v1866 = vpop.f32.mrb[0].mxu0
        %1867 = vmatprep.mubr.bf16.mxu0 %v1384
        %1868 = vmatmul.mubr.bf16.gmra.mrb[0].mxu0 %v1383
        %v1869 = vpop.f32.mrb[0].mxu0
        %v1870 = vadd.f32 0.0, %v1869
        %v1871 = vpop.f32.mrb[0].mxu0
        %v1872 = vpop.f32.mrb[0].mxu0
        %v1873 = vadd.f32 0.0, %v1872
        %v1874 = vpop.f32.mrb[0].mxu0
        %1875 = vmatprep.mubr.bf16.mxu0 %v1387
        %1876 = vmatmul.mubr.bf16.gmra.mrb[0].mxu0 %v1386
        %v1877 = vpop.f32.mrb[0].mxu0
        %v1878 = vadd.f32 0.0, %v1877
        %v1879 = vpop.f32.mrb[0].mxu0
        %v1880 = vpop.f32.mrb[0].mxu0
        %v1881 = vadd.f32 0.0, %v1880
        %v1882 = vpop.f32.mrb[0].mxu0
        %1883 = vmatprep.mubr.bf16.mxu0 %v1390
        %1884 = vmatmul.mubr.bf16.gmra.mrb[0].mxu0 %v1389
        %v1885 = vpop.f32.mrb[0].mxu0
        %v1886 = vadd.f32 0.0, %v1885
        %v1887 = vpop.f32.mrb[0].mxu0
        %v1888 = vpop.f32.mrb[0].mxu0
        %v1889 = vadd.f32 0.0, %v1888
        %v1890 = vpop.f32.mrb[0].mxu0
        %1891 = vmatprep.mubr.bf16.mxu0 %v1393
        %1892 = vmatmul.mubr.bf16.gmra.mrb[0].mxu0 %v1392
        %v1893 = vpop.f32.mrb[0].mxu0
        %v1894 = vadd.f32 0.0, %v1893
        %v1895 = vpop.f32.mrb[0].mxu0
        %v1896 = vpop.f32.mrb[0].mxu0
        %v1897 = vadd.f32 0.0, %v1896
        %v1898 = vpop.f32.mrb[0].mxu0
        %1899 = vmatprep.mubr.bf16.mxu0 %v1396
        %1900 = vmatmul.mubr.bf16.gmra.mrb[0].mxu0 %v1395
        %v1901 = vpop.f32.mrb[0].mxu0
        %v1902 = vadd.f32 0.0, %v1901
        %v1903 = vpop.f32.mrb[0].mxu0
        %v1904 = vpop.f32.mrb[0].mxu0
        %v1905 = vadd.f32 0.0, %v1904
        %v1906 = vpop.f32.mrb[0].mxu0
        %1907 = vmatprep.mubr.bf16.mxu0 %v1399
        %1908 = vmatmul.mubr.bf16.gmra.mrb[0].mxu0 %v1398
        %v1909 = vpop.f32.mrb[0].mxu0
        %v1910 = vadd.f32 0.0, %v1909
        %v1911 = vpop.f32.mrb[0].mxu0
        %v1912 = vpop.f32.mrb[0].mxu0
        %v1913 = vadd.f32 0.0, %v1912
        %v1914 = vpop.f32.mrb[0].mxu0
        %1915 = vmatprep.mubr.bf16.mxu0 %v1402
        %1916 = vmatmul.mubr.bf16.gmra.mrb[0].mxu0 %v1401
        %v1917 = vpop.f32.mrb[0].mxu0
        %v1918 = vadd.f32 0.0, %v1917
        %v1919 = vpop.f32.mrb[0].mxu0
        %v1920 = vpop.f32.mrb[0].mxu0
        %v1921 = vadd.f32 0.0, %v1920
        %v1922 = vpop.f32.mrb[0].mxu0
        %1923 = vmatprep.mubr.bf16.mxu0 %v1405
        %1924 = vmatmul.mubr.bf16.gmra.mrb[0].mxu0 %v1404
        %v1925 = vpop.f32.mrb[0].mxu0
        %v1926 = vadd.f32 0.0, %v1925
        %v1927 = vpop.f32.mrb[0].mxu0
        %v1928 = vpop.f32.mrb[0].mxu0
        %v1929 = vadd.f32 0.0, %v1928
        %v1930 = vpop.f32.mrb[0].mxu0
        %1931 = vmatprep.mubr.bf16.mxu0 %v1408
        %1932 = vmatmul.mubr.bf16.gmra.mrb[0].mxu0 %v1407
        %v1933 = vpop.f32.mrb[0].mxu0
        %v1934 = vadd.f32 0.0, %v1933
        %v1935 = vpop.f32.mrb[0].mxu0
        %v1936 = vpop.f32.mrb[0].mxu0
        %v1937 = vadd.f32 0.0, %v1936
        %v1938 = vpop.f32.mrb[0].mxu0
        %1939 = vmatprep.mubr.bf16.mxu0 %v1411
        %1940 = vmatmul.mubr.bf16.gmra.mrb[0].mxu0 %v1410
        %v1941 = vpop.f32.mrb[0].mxu0
        %v1942 = vadd.f32 0.0, %v1941
        %v1943 = vpop.f32.mrb[0].mxu0
        %v1944 = vpop.f32.mrb[0].mxu0
        %v1945 = vadd.f32 0.0, %v1944
        %v1946 = vpop.f32.mrb[0].mxu0
        %1947 = vmatprep.mubr.bf16.mxu0 %v1414
        %1948 = vmatmul.mubr.bf16.gmra.mrb[0].mxu0 %v1413
        %v1949 = vpop.f32.mrb[0].mxu0
        %v1950 = vadd.f32 0.0, %v1949
        %v1951 = vpop.f32.mrb[0].mxu0
        %v1952 = vpop.f32.mrb[0].mxu0
        %v1953 = vadd.f32 0.0, %v1952
        %v1954 = vpop.f32.mrb[0].mxu0
        %1955 = vmatprep.mubr.bf16.mxu0 %v1417
        %1956 = vmatmul.mubr.bf16.gmra.mrb[0].mxu0 %v1416
        %v1957 = vpop.f32.mrb[0].mxu0
        %v1958 = vadd.f32 0.0, %v1957
        %v1959 = vpop.f32.mrb[0].mxu0
        %v1960 = vpop.f32.mrb[0].mxu0
        %v1961 = vadd.f32 0.0, %v1960
        %v1962 = vpop.f32.mrb[0].mxu0
        %1963 = vmatprep.mubr.bf16.mxu0 %v1420
        %1964 = vmatmul.mubr.bf16.gmra.mrb[0].mxu0 %v1419
        %v1965 = vpop.f32.mrb[0].mxu0
        %v1966 = vadd.f32 0.0, %v1965
        %v1967 = vpop.f32.mrb[0].mxu0
        %v1968 = vpop.f32.mrb[0].mxu0
        %v1969 = vadd.f32 0.0, %v1968
        %v1970 = vpop.f32.mrb[0].mxu0
        %1971 = vmatprep.mubr.bf16.mxu0 %v1423
        %1972 = vmatmul.mubr.bf16.gmra.mrb[0].mxu0 %v1422
        %v1973 = vpop.f32.mrb[0].mxu0
        %v1974 = vadd.f32 0.0, %v1973
        %v1975 = vpop.f32.mrb[0].mxu0
        %v1976 = vpop.f32.mrb[0].mxu0
        %v1977 = vadd.f32 0.0, %v1976
        %v1978 = vpop.f32.mrb[0].mxu0
        %1979 = vmatprep.mubr.bf16.mxu0 %v1426
        %1980 = vmatmul.mubr.bf16.gmra.mrb[0].mxu0 %v1425
        %v1981 = vpop.f32.mrb[0].mxu0
        %v1982 = vadd.f32 0.0, %v1981
        %v1983 = vpop.f32.mrb[0].mxu0
        %v1984 = vpop.f32.mrb[0].mxu0
        %v1985 = vadd.f32 0.0, %v1984
        %v1986 = vpop.f32.mrb[0].mxu0
        %1987 = vmatprep.mubr.bf16.mxu0 %v1429
        %1988 = vmatmul.mubr.bf16.gmra.mrb[0].mxu0 %v1428
        %v1989 = vpop.f32.mrb[0].mxu0
        %v1990 = vadd.f32 0.0, %v1989
        %v1991 = vpop.f32.mrb[0].mxu0
        %v1992 = vpop.f32.mrb[0].mxu0
        %v1993 = vadd.f32 0.0, %v1992
        %v1994 = vpop.f32.mrb[0].mxu0
        %1995 = vmatprep.mubr.bf16.mxu0 %v1432
        %1996 = vmatmul.mubr.bf16.gmra.mrb[0].mxu0 %v1431
        %v1997 = vpop.f32.mrb[0].mxu0
        %v1998 = vadd.f32 0.0, %v1997
        %v1999 = vpop.f32.mrb[0].mxu0
        %v2000 = vpop.f32.mrb[0].mxu0
        %v2001 = vadd.f32 0.0, %v2000
        %v2002 = vpop.f32.mrb[0].mxu0
        %2003 = vmatprep.mubr.bf16.mxu0 %v1435
        %2004 = vmatmul.mubr.bf16.gmra.mrb[0].mxu0 %v1434
        %v2005 = vpop.f32.mrb[0].mxu0
        %v2006 = vadd.f32 0.0, %v2005
        %v2007 = vpop.f32.mrb[0].mxu0
        %v2008 = vpop.f32.mrb[0].mxu0
        %v2009 = vadd.f32 0.0, %v2008
        %v2010 = vpop.f32.mrb[0].mxu0
        %2011 = vmatprep.mubr.bf16.mxu0 %v1438
        %2012 = vmatmul.mubr.bf16.gmra.mrb[0].mxu0 %v1437
        %v2013 = vpop.f32.mrb[0].mxu0
        %v2014 = vadd.f32 0.0, %v2013
        %v2015 = vpop.f32.mrb[0].mxu0
        %v2016 = vpop.f32.mrb[0].mxu0
        %v2017 = vadd.f32 0.0, %v2016
        %v2018 = vpop.f32.mrb[0].mxu0
        %2019 = vmatprep.mubr.bf16.mxu0 %v1441
        %2020 = vmatmul.mubr.bf16.gmra.mrb[0].mxu0 %v1440
        %v2021 = vpop.f32.mrb[0].mxu0
        %v2022 = vadd.f32 0.0, %v2021
        %v2023 = vpop.f32.mrb[0].mxu0
        %v2024 = vpop.f32.mrb[0].mxu0
        %v2025 = vadd.f32 0.0, %v2024
        %v2026 = vpop.f32.mrb[0].mxu0
        %2027 = vmatprep.mubr.bf16.mxu0 %v1444
        %2028 = vmatmul.mubr.bf16.gmra.mrb[0].mxu0 %v1443
        %v2029 = vpop.f32.mrb[0].mxu0
        %v2030 = vadd.f32 0.0, %v2029
        %v2031 = vpop.f32.mrb[0].mxu0
        %v2032 = vpop.f32.mrb[0].mxu0
        %v2033 = vadd.f32 0.0, %v2032
        %v2034 = vpop.f32.mrb[0].mxu0
        %2035 = vmatprep.mubr.bf16.mxu0 %v1447
        %2036 = vmatmul.mubr.bf16.gmra.mrb[0].mxu0 %v1446
        %v2037 = vpop.f32.mrb[0].mxu0
        %v2038 = vadd.f32 0.0, %v2037
        %v2039 = vpop.f32.mrb[0].mxu0
        %v2040 = vpop.f32.mrb[0].mxu0
        %v2041 = vadd.f32 0.0, %v2040
        %v2042 = vpop.f32.mrb[0].mxu0
        %2043 = vmatprep.mubr.bf16.mxu0 %v1450
        %2044 = vmatmul.mubr.bf16.gmra.mrb[0].mxu0 %v1449
        %v2045 = vpop.f32.mrb[0].mxu0
        %v2046 = vadd.f32 0.0, %v2045
        %v2047 = vpop.f32.mrb[0].mxu0
        %v2048 = vpop.f32.mrb[0].mxu0
        %v2049 = vadd.f32 0.0, %v2048
        %v2050 = vpop.f32.mrb[0].mxu0
        %2051 = vmatprep.mubr.bf16.mxu0 %v1453
        %2052 = vmatmul.mubr.bf16.gmra.mrb[0].mxu0 %v1452
        %v2053 = vpop.f32.mrb[0].mxu0
        %v2054 = vadd.f32 0.0, %v2053
        %v2055 = vpop.f32.mrb[0].mxu0
        %v2056 = vpop.f32.mrb[0].mxu0
        %v2057 = vadd.f32 0.0, %v2056
        %v2058 = vpop.f32.mrb[0].mxu0
        %2059 = vmatprep.mubr.bf16.mxu0 %v1456
        %2060 = vmatmul.mubr.bf16.gmra.mrb[0].mxu0 %v1455
        %v2061 = vpop.f32.mrb[0].mxu0
        %v2062 = vadd.f32 0.0, %v2061
        %v2063 = vpop.f32.mrb[0].mxu0
        %v2064 = vpop.f32.mrb[0].mxu0
        %v2065 = vadd.f32 0.0, %v2064
        %v2066 = vpop.f32.mrb[0].mxu0
        %2067 = vmatprep.mubr.bf16.mxu0 %v1459
        %2068 = vmatmul.mubr.bf16.gmra.mrb[0].mxu0 %v1458
        %v2069 = vpop.f32.mrb[0].mxu0
        %v2070 = vadd.f32 0.0, %v2069
        %v2071 = vpop.f32.mrb[0].mxu0
        %v2072 = vpop.f32.mrb[0].mxu0
        %v2073 = vadd.f32 0.0, %v2072
        %v2074 = vpop.f32.mrb[0].mxu0
        %2075 = vmatprep.mubr.bf16.mxu0 %v1462
        %2076 = vmatmul.mubr.bf16.gmra.mrb[0].mxu0 %v1461
        %v2077 = vpop.f32.mrb[0].mxu0
        %v2078 = vadd.f32 0.0, %v2077
        %v2079 = vpop.f32.mrb[0].mxu0
        %v2080 = vpop.f32.mrb[0].mxu0
        %v2081 = vadd.f32 0.0, %v2080
        %v2082 = vpop.f32.mrb[0].mxu0
        %2083 = vmatprep.mubr.bf16.mxu0 %v1465
        %2084 = vmatmul.mubr.bf16.gmra.mrb[0].mxu0 %v1464
        %v2085 = vpop.f32.mrb[0].mxu0
        %v2086 = vadd.f32 0.0, %v2085
        %v2087 = vpop.f32.mrb[0].mxu0
        %v2088 = vpop.f32.mrb[0].mxu0
        %v2089 = vadd.f32 0.0, %v2088
        %v2090 = vpop.f32.mrb[0].mxu0
        %2091 = vmatprep.mubr.bf16.mxu0 %v1468
        %2092 = vmatmul.mubr.bf16.gmra.mrb[0].mxu0 %v1467
        %v2093 = vpop.f32.mrb[0].mxu0
        %v2094 = vadd.f32 0.0, %v2093
        %v2095 = vpop.f32.mrb[0].mxu0
        %v2096 = vpop.f32.mrb[0].mxu0
        %v2097 = vadd.f32 0.0, %v2096
        %v2098 = vpop.f32.mrb[0].mxu0
        %2099 = vmatprep.mubr.bf16.mxu0 %v1471
        %2100 = vmatmul.mubr.bf16.gmra.mrb[0].mxu0 %v1470
        %v2101 = vpop.f32.mrb[0].mxu0
        %v2102 = vadd.f32 0.0, %v2101
        %v2103 = vpop.f32.mrb[0].mxu0
        %v2104 = vpop.f32.mrb[0].mxu0
        %v2105 = vadd.f32 0.0, %v2104
        %v2106 = vpop.f32.mrb[0].mxu0
        %2107 = vmatprep.mubr.bf16.mxu0 %v1474
        %2108 = vmatmul.mubr.bf16.gmra.mrb[0].mxu0 %v1473
        %v2109 = vpop.f32.mrb[0].mxu0
        %v2110 = vadd.f32 0.0, %v2109
        %v2111 = vpop.f32.mrb[0].mxu0
        %v2112 = vpop.f32.mrb[0].mxu0
        %v2113 = vadd.f32 0.0, %v2112
        %v2114 = vpop.f32.mrb[0].mxu0
        %2115 = vmatprep.mubr.bf16.mxu0 %v1477
        %2116 = vmatmul.mubr.bf16.gmra.mrb[0].mxu0 %v1476
        %v2117 = vpop.f32.mrb[0].mxu0
        %v2118 = vadd.f32 0.0, %v2117
        %v2119 = vpop.f32.mrb[0].mxu0
        %v2120 = vpop.f32.mrb[0].mxu0
        %v2121 = vadd.f32 0.0, %v2120
        %v2122 = vpop.f32.mrb[0].mxu0
        %2123 = vmatprep.mubr.bf16.mxu0 %v1480
        %2124 = vmatmul.mubr.bf16.gmra.mrb[0].mxu0 %v1479
        %v2125 = vpop.f32.mrb[0].mxu0
        %v2126 = vadd.f32 0.0, %v2125
        %v2127 = vpop.f32.mrb[0].mxu0
        %v2128 = vpop.f32.mrb[0].mxu0
        %v2129 = vadd.f32 0.0, %v2128
        %v2130 = vpop.f32.mrb[0].mxu0
        %2131 = vmatprep.mubr.bf16.mxu0 %v1483
        %2132 = vmatmul.mubr.bf16.gmra.mrb[0].mxu0 %v1482
        %v2133 = vpop.f32.mrb[0].mxu0
        %v2134 = vadd.f32 0.0, %v2133
        %v2135 = vpop.f32.mrb[0].mxu0
        %v2136 = vpop.f32.mrb[0].mxu0
        %v2137 = vadd.f32 0.0, %v2136
        %v2138 = vpop.f32.mrb[0].mxu0
        %2139 = vmatprep.mubr.bf16.mxu0 %v1486
        %2140 = vmatmul.mubr.bf16.gmra.mrb[0].mxu0 %v1485
        %v2141 = vpop.f32.mrb[0].mxu0
        %v2142 = vadd.f32 0.0, %v2141
        %v2143 = vpop.f32.mrb[0].mxu0
        %v2144 = vpop.f32.mrb[0].mxu0
        %v2145 = vadd.f32 0.0, %v2144
        %v2146 = vpop.f32.mrb[0].mxu0
        %2147 = vmatprep.mubr.bf16.mxu0 %v1489
        %2148 = vmatmul.mubr.bf16.gmra.mrb[0].mxu0 %v1488
        %v2149 = vpop.f32.mrb[0].mxu0
        %v2150 = vadd.f32 0.0, %v2149
        %v2151 = vpop.f32.mrb[0].mxu0
        %v2152 = vpop.f32.mrb[0].mxu0
        %v2153 = vadd.f32 0.0, %v2152
        %v2154 = vpop.f32.mrb[0].mxu0
        %2155 = vmatprep.mubr.bf16.mxu0 %v1492
        %2156 = vmatmul.mubr.bf16.gmra.mrb[0].mxu0 %v1491
        %v2157 = vpop.f32.mrb[0].mxu0
        %v2158 = vadd.f32 0.0, %v2157
        %v2159 = vpop.f32.mrb[0].mxu0
        %v2160 = vpop.f32.mrb[0].mxu0
        %v2161 = vadd.f32 0.0, %v2160
        %v2162 = vpop.f32.mrb[0].mxu0
        %2163 = vmatprep.mubr.bf16.mxu0 %v1495
        %2164 = vmatmul.mubr.bf16.gmra.mrb[0].mxu0 %v1494
        %v2165 = vpop.f32.mrb[0].mxu0
        %v2166 = vadd.f32 0.0, %v2165
        %v2167 = vpop.f32.mrb[0].mxu0
        %v2168 = vpop.f32.mrb[0].mxu0
        %v2169 = vadd.f32 0.0, %v2168
        %v2170 = vpop.f32.mrb[0].mxu0
        %2171 = vmatprep.mubr.bf16.mxu0 %v1498
        %2172 = vmatmul.mubr.bf16.gmra.mrb[0].mxu0 %v1497
        %v2173 = vpop.f32.mrb[0].mxu0
        %v2174 = vadd.f32 0.0, %v2173
        %v2175 = vpop.f32.mrb[0].mxu0
        %v2176 = vpop.f32.mrb[0].mxu0
        %v2177 = vadd.f32 0.0, %v2176
        %v2178 = vpop.f32.mrb[0].mxu0
        %2179 = vmatprep.mubr.bf16.mxu0 %v1501
        %2180 = vmatmul.mubr.bf16.gmra.mrb[0].mxu0 %v1500
        %v2181 = vpop.f32.mrb[0].mxu0
        %v2182 = vadd.f32 0.0, %v2181
        %v2183 = vpop.f32.mrb[0].mxu0
        %v2184 = vpop.f32.mrb[0].mxu0
        %v2185 = vadd.f32 0.0, %v2184
        %v2186 = vpop.f32.mrb[0].mxu0
        %2187 = vmatprep.mubr.bf16.mxu0 %v1504
        %2188 = vmatmul.mubr.bf16.gmra.mrb[0].mxu0 %v1503
        %v2189 = vpop.f32.mrb[0].mxu0
        %v2190 = vadd.f32 0.0, %v2189
        %v2191 = vpop.f32.mrb[0].mxu0
        %v2192 = vpop.f32.mrb[0].mxu0
        %v2193 = vadd.f32 0.0, %v2192
        %v2194 = vpop.f32.mrb[0].mxu0
        %2195 = vmatprep.mubr.bf16.mxu0 %v1507
        %2196 = vmatmul.mubr.bf16.gmra.mrb[0].mxu0 %v1506
        %v2197 = vpop.f32.mrb[0].mxu0
        %v2198 = vadd.f32 0.0, %v2197
        %v2199 = vpop.f32.mrb[0].mxu0
        %v2200 = vpop.f32.mrb[0].mxu0
        %v2201 = vadd.f32 0.0, %v2200
        %v2202 = vpop.f32.mrb[0].mxu0
        %2203 = vmatprep.mubr.bf16.mxu0 %v1510
        %2204 = vmatmul.mubr.bf16.gmra.mrb[0].mxu0 %v1509
        %v2205 = vpop.f32.mrb[0].mxu0
        %v2206 = vadd.f32 0.0, %v2205
        %v2207 = vpop.f32.mrb[0].mxu0
        %v2208 = vpop.f32.mrb[0].mxu0
        %v2209 = vadd.f32 0.0, %v2208
        %v2210 = vpop.f32.mrb[0].mxu0
        %2211 = vmatprep.mubr.bf16.mxu0 %v1513
        %2212 = vmatmul.mubr.bf16.gmra.mrb[0].mxu0 %v1512
        %v2213 = vpop.f32.mrb[0].mxu0
        %v2214 = vadd.f32 0.0, %v2213
        %v2215 = vpop.f32.mrb[0].mxu0
        %v2216 = vpop.f32.mrb[0].mxu0
        %v2217 = vadd.f32 0.0, %v2216
        %v2218 = vpop.f32.mrb[0].mxu0
        %2219 = vmatprep.mubr.bf16.mxu0 %v1516
        %2220 = vmatmul.mubr.bf16.gmra.mrb[0].mxu0 %v1515
        %v2221 = vpop.f32.mrb[0].mxu0
        %v2222 = vadd.f32 0.0, %v2221
        %v2223 = vpop.f32.mrb[0].mxu0
        %v2224 = vpop.f32.mrb[0].mxu0
        %v2225 = vadd.f32 0.0, %v2224
        %v2226 = vpop.f32.mrb[0].mxu0
        %2227 = vmatprep.mubr.bf16.mxu0 %v1519
        %2228 = vmatmul.mubr.bf16.gmra.mrb[0].mxu0 %v1518
        %v2229 = vpop.f32.mrb[0].mxu0
        %v2230 = vadd.f32 0.0, %v2229
        %v2231 = vpop.f32.mrb[0].mxu0
        %v2232 = vpop.f32.mrb[0].mxu0
        %v2233 = vadd.f32 0.0, %v2232
        %v2234 = vpop.f32.mrb[0].mxu0
        %2235 = vmatprep.mubr.bf16.mxu0 %v1522
        %2236 = vmatmul.mubr.bf16.gmra.mrb[0].mxu0 %v1521
        %v2237 = vpop.f32.mrb[0].mxu0
        %v2238 = vadd.f32 0.0, %v2237
        %v2239 = vpop.f32.mrb[0].mxu0
        %v2240 = vpop.f32.mrb[0].mxu0
        %v2241 = vadd.f32 0.0, %v2240
        %v2242 = vpop.f32.mrb[0].mxu0
        %2243 = vmatprep.mubr.bf16.mxu0 %v1525
        %2244 = vmatmul.mubr.bf16.gmra.mrb[0].mxu0 %v1524
        %v2245 = vpop.f32.mrb[0].mxu0
        %v2246 = vadd.f32 0.0, %v2245
        %v2247 = vpop.f32.mrb[0].mxu0
        %v2248 = vpop.f32.mrb[0].mxu0
        %v2249 = vadd.f32 0.0, %v2248
        %v2250 = vpop.f32.mrb[0].mxu0
        %2251 = vmatprep.mubr.bf16.mxu0 %v1528
        %2252 = vmatmul.mubr.bf16.gmra.mrb[0].mxu0 %v1527
        %v2253 = vpop.f32.mrb[0].mxu0
        %v2254 = vadd.f32 0.0, %v2253
        %v2255 = vpop.f32.mrb[0].mxu0
        %v2256 = vpop.f32.mrb[0].mxu0
        %v2257 = vadd.f32 0.0, %v2256
        %v2258 = vpop.f32.mrb[0].mxu0
        %2259 = vmatprep.mubr.bf16.mxu0 %v1531
        %2260 = vmatmul.mubr.bf16.gmra.mrb[0].mxu0 %v1530
        %v2261 = vpop.f32.mrb[0].mxu0
        %v2262 = vadd.f32 0.0, %v2261
        %v2263 = vpop.f32.mrb[0].mxu0
        %v2264 = vpop.f32.mrb[0].mxu0
        %v2265 = vadd.f32 0.0, %v2264
        %v2266 = vpop.f32.mrb[0].mxu0
        %2267 = vmatprep.mubr.bf16.mxu0 %v1534
        %2268 = vmatmul.mubr.bf16.gmra.mrb[0].mxu0 %v1533
        %v2269 = vpop.f32.mrb[0].mxu0
        %v2270 = vadd.f32 0.0, %v2269
        %v2271 = vpop.f32.mrb[0].mxu0
        %v2272 = vpop.f32.mrb[0].mxu0
        %v2273 = vadd.f32 0.0, %v2272
        %v2274 = vpop.f32.mrb[0].mxu0
        %2275 = vmatprep.mubr.bf16.mxu0 %v1537
        %2276 = vmatmul.mubr.bf16.gmra.mrb[0].mxu0 %v1536
        %v2277 = vpop.f32.mrb[0].mxu0
        %v2278 = vadd.f32 0.0, %v2277
        %v2279 = vpop.f32.mrb[0].mxu0
        %v2280 = vpop.f32.mrb[0].mxu0
        %v2281 = vadd.f32 0.0, %v2280
        %v2282 = vpop.f32.mrb[0].mxu0
        %2283 = vmatprep.mubr.bf16.mxu0 %v1540
        %2284 = vmatmul.mubr.bf16.gmra.mrb[0].mxu0 %v1539
        %v2285 = vpop.f32.mrb[0].mxu0
        %v2286 = vadd.f32 0.0, %v2285
        %v2287 = vpop.f32.mrb[0].mxu0
        %v2288 = vpop.f32.mrb[0].mxu0
        %v2289 = vadd.f32 0.0, %v2288
        %v2290 = vpop.f32.mrb[0].mxu0
        %2291 = vmatprep.mubr.bf16.mxu0 %v1543
        %2292 = vmatmul.mubr.bf16.gmra.mrb[0].mxu0 %v1542
        %v2293 = vpop.f32.mrb[0].mxu0
        %v2294 = vadd.f32 0.0, %v2293
        %v2295 = vpop.f32.mrb[0].mxu0
        %v2296 = vpop.f32.mrb[0].mxu0
        %v2297 = vadd.f32 0.0, %v2296
        %v2298 = vpop.f32.mrb[0].mxu0
        %2299 = vmatprep.mubr.bf16.mxu0 %v1546
        %2300 = vmatmul.mubr.bf16.gmra.mrb[0].mxu0 %v1545
        %v2301 = vpop.f32.mrb[0].mxu0
        %v2302 = vadd.f32 0.0, %v2301
        %v2303 = vpop.f32.mrb[0].mxu0
        %v2304 = vpop.f32.mrb[0].mxu0
        %v2305 = vadd.f32 0.0, %v2304
        %v2306 = vpop.f32.mrb[0].mxu0
        %2307 = vmatprep.mubr.bf16.mxu0 %v1549
        %2308 = vmatmul.mubr.bf16.gmra.mrb[0].mxu0 %v1548
        %v2309 = vpop.f32.mrb[0].mxu0
        %v2310 = vadd.f32 0.0, %v2309
        %v2311 = vpop.f32.mrb[0].mxu0
        %v2312 = vpop.f32.mrb[0].mxu0
        %v2313 = vadd.f32 0.0, %v2312
        %v2314 = vpop.f32.mrb[0].mxu0
        %2315 = vmatprep.mubr.bf16.mxu0 %v1552
        %2316 = vmatmul.mubr.bf16.gmra.mrb[0].mxu0 %v1551
        %v2317 = vpop.f32.mrb[0].mxu0
        %v2318 = vadd.f32 0.0, %v2317
        %v2319 = vpop.f32.mrb[0].mxu0
        %v2320 = vpop.f32.mrb[0].mxu0
        %v2321 = vadd.f32 0.0, %v2320
        %v2322 = vpop.f32.mrb[0].mxu0
        %2323 = vmatprep.mubr.bf16.mxu0 %v1555
        %2324 = vmatmul.mubr.bf16.gmra.mrb[0].mxu0 %v1554
        %v2325 = vpop.f32.mrb[0].mxu0
        %v2326 = vadd.f32 0.0, %v2325
        %v2327 = vpop.f32.mrb[0].mxu0
        %v2328 = vpop.f32.mrb[0].mxu0
        %v2329 = vadd.f32 0.0, %v2328
        %v2330 = vpop.f32.mrb[0].mxu0
        %2331 = vmatprep.mubr.bf16.mxu0 %v1558
        %2332 = vmatmul.mubr.bf16.gmra.mrb[0].mxu0 %v1557
        %v2333 = vpop.f32.mrb[0].mxu0
        %v2334 = vadd.f32 0.0, %v2333
        %v2335 = vpop.f32.mrb[0].mxu0
        %v2336 = vpop.f32.mrb[0].mxu0
        %v2337 = vadd.f32 0.0, %v2336
        %v2338 = vpop.f32.mrb[0].mxu0
        %2339 = vmatprep.mubr.bf16.mxu0 %v1561
        %2340 = vmatmul.mubr.bf16.gmra.mrb[0].mxu0 %v1560
        %v2341 = vpop.f32.mrb[0].mxu0
        %v2342 = vadd.f32 0.0, %v2341
        %v2343 = vpop.f32.mrb[0].mxu0
        %v2344 = vpop.f32.mrb[0].mxu0
        %v2345 = vadd.f32 0.0, %v2344
        %v2346 = vpop.f32.mrb[0].mxu0
        %2347 = vmatprep.mubr.bf16.mxu0 %v1564
        %2348 = vmatmul.mubr.bf16.gmra.mrb[0].mxu0 %v1563
        %v2349 = vpop.f32.mrb[0].mxu0
        %v2350 = vadd.f32 0.0, %v2349
        %v2351 = vpop.f32.mrb[0].mxu0
        %v2352 = vpop.f32.mrb[0].mxu0
        %v2353 = vadd.f32 0.0, %v2352
        %v2354 = vpop.f32.mrb[0].mxu0
        %2355 = vmatprep.mubr.bf16.mxu0 %v1567
        %2356 = vmatmul.mubr.bf16.gmra.mrb[0].mxu0 %v1566
        %v2357 = vpop.f32.mrb[0].mxu0
        %v2358 = vadd.f32 0.0, %v2357
        %v2359 = vpop.f32.mrb[0].mxu0
        %v2360 = vpop.f32.mrb[0].mxu0
        %v2361 = vadd.f32 0.0, %v2360
        %v2362 = vpop.f32.mrb[0].mxu0
        %2363 = vmatprep.mubr.bf16.mxu0 %v1570
        %2364 = vmatmul.mubr.bf16.gmra.mrb[0].mxu0 %v1569
        %v2365 = vpop.f32.mrb[0].mxu0
        %v2366 = vadd.f32 0.0, %v2365
        %v2367 = vpop.f32.mrb[0].mxu0
        %v2368 = vpop.f32.mrb[0].mxu0
        %v2369 = vadd.f32 0.0, %v2368
        %v2370 = vpop.f32.mrb[0].mxu0
        %2371 = vmatprep.mubr.bf16.mxu0 %v1573
        %2372 = vmatmul.mubr.bf16.gmra.mrb[0].mxu0 %v1572
        %v2373 = vpop.f32.mrb[0].mxu0
        %v2374 = vadd.f32 0.0, %v2373
        %v2375 = vpop.f32.mrb[0].mxu0
        %v2376 = vpop.f32.mrb[0].mxu0
        %v2377 = vadd.f32 0.0, %v2376
        %v2378 = vpop.f32.mrb[0].mxu0
        %2379 = vmatprep.mubr.bf16.mxu0 %v1576
        %2380 = vmatmul.mubr.bf16.gmra.mrb[0].mxu0 %v1575
        %v2381 = vpop.f32.mrb[0].mxu0
        %v2382 = vadd.f32 0.0, %v2381
        %v2383 = vpop.f32.mrb[0].mxu0
        %v2384 = vpop.f32.mrb[0].mxu0
        %v2385 = vadd.f32 0.0, %v2384
        %v2386 = vpop.f32.mrb[0].mxu0
        %2387 = vmatprep.mubr.bf16.mxu0 %v1579
        %2388 = vmatmul.mubr.bf16.gmra.mrb[0].mxu0 %v1578
        %v2389 = vpop.f32.mrb[0].mxu0
        %v2390 = vadd.f32 0.0, %v2389
        %v2391 = vpop.f32.mrb[0].mxu0
        %v2392 = vpop.f32.mrb[0].mxu0
        %v2393 = vadd.f32 0.0, %v2392
        %v2394 = vpop.f32.mrb[0].mxu0
        %2395 = vmatprep.mubr.bf16.mxu0 %v1582
        %2396 = vmatmul.mubr.bf16.gmra.mrb[0].mxu0 %v1581
        %v2397 = vpop.f32.mrb[0].mxu0
        %v2398 = vadd.f32 0.0, %v2397
        %v2399 = vpop.f32.mrb[0].mxu0
        %v2400 = vpop.f32.mrb[0].mxu0
        %v2401 = vadd.f32 0.0, %v2400
        %v2402 = vpop.f32.mrb[0].mxu0
        %2403 = vmatprep.mubr.bf16.mxu0 %v1585
        %2404 = vmatmul.mubr.bf16.gmra.mrb[0].mxu0 %v1584
        %v2405 = vpop.f32.mrb[0].mxu0
        %v2406 = vadd.f32 0.0, %v2405
        %v2407 = vpop.f32.mrb[0].mxu0
        %v2408 = vpop.f32.mrb[0].mxu0
        %v2409 = vadd.f32 0.0, %v2408
        %v2410 = vpop.f32.mrb[0].mxu0
        %2411 = vdwg.mxu0
        %2412 = vmatprep.subr.bf16.mxu0 0
        %2413 = vmatpush1.bf16.msra.mxu0 %v355
        %2414 = vmatprep.subr.bf16.mxu0 0
        %2415 = vmatpush1.bf16.msra.mxu0 %v356
        %2416 = vmatprep.subr.bf16.mxu0 0
        %2417 = vmatpush1.bf16.msra.mxu0 %v357
        %2418 = vmatprep.subr.bf16.mxu0 0
        %2419 = vmatpush1.bf16.msra.mxu0 %v358
        %2420 = vmatprep.subr.bf16.mxu0 0
        %2421 = vmatpush1.bf16.msra.mxu0 %v359
        %2422 = vmatprep.subr.bf16.mxu0 0
        %2423 = vmatpush1.bf16.msra.mxu0 %v360
        %2424 = vmatprep.subr.bf16.mxu0 0
        %2425 = vmatpush1.bf16.msra.mxu0 %v361
        %2426 = vmatprep.subr.bf16.mxu0 0
        %2427 = vmatpush1.bf16.msra.mxu0 %v362
        %2428 = vmatprep.subr.bf16.mxu0 0
        %2429 = vmatpush1.bf16.msra.mxu0 0
        %2430 = vmatprep.subr.bf16.mxu0 0
        %2431 = vmatpush1.bf16.msra.mxu0 0
        %2432 = vmatprep.subr.bf16.mxu0 0
        %2433 = vmatpush1.bf16.msra.mxu0 0
        %2434 = vmatprep.subr.bf16.mxu0 0
        %2435 = vmatpush1.bf16.msra.mxu0 0
        %2436 = vmatprep.subr.bf16.mxu0 0
        %2437 = vmatpush1.bf16.msra.mxu0 0
        %2438 = vmatprep.subr.bf16.mxu0 0
        %2439 = vmatpush1.bf16.msra.mxu0 0
        %2440 = vmatprep.subr.bf16.mxu0 0
        %2441 = vmatpush1.bf16.msra.mxu0 0
        %2442 = vmatprep.subr.bf16.mxu0 0
        %2443 = vmatpush1.bf16.msra.mxu0 0
        %2444 = vmatprep.mubr.bf16.mxu0 0
        %2445 = vmatmul.mubr.bf16.gmra.mrb[0].mxu0 %v1373
        %v2446 = vpop.f32.mrb[0].mxu0
        %v2447 = vadd.f32 %v1838, %v2446
        %v2448 = vpop.f32.mrb[0].mxu0
        %v2449 = vpop.f32.mrb[0].mxu0
        %v2450 = vadd.f32 %v1841, %v2449
        %v2451 = vpop.f32.mrb[0].mxu0
        %2452 = vmatprep.mubr.bf16.mxu0 0
        %2453 = vmatmul.mubr.bf16.gmra.mrb[0].mxu0 %v1376
        %v2454 = vpop.f32.mrb[0].mxu0
        %v2455 = vadd.f32 %v1846, %v2454
        %v2456 = vpop.f32.mrb[0].mxu0
        %v2457 = vpop.f32.mrb[0].mxu0
        %v2458 = vadd.f32 %v1849, %v2457
        %v2459 = vpop.f32.mrb[0].mxu0
        %2460 = vmatprep.mubr.bf16.mxu0 0
        %2461 = vmatmul.mubr.bf16.gmra.mrb[0].mxu0 %v1379
        %v2462 = vpop.f32.mrb[0].mxu0
        %v2463 = vadd.f32 %v1854, %v2462
        %v2464 = vpop.f32.mrb[0].mxu0
        %v2465 = vpop.f32.mrb[0].mxu0
        %v2466 = vadd.f32 %v1857, %v2465
        %v2467 = vpop.f32.mrb[0].mxu0
        %2468 = vmatprep.mubr.bf16.mxu0 0
        %2469 = vmatmul.mubr.bf16.gmra.mrb[0].mxu0 %v1382
        %v2470 = vpop.f32.mrb[0].mxu0
        %v2471 = vadd.f32 %v1862, %v2470
        %v2472 = vpop.f32.mrb[0].mxu0
        %v2473 = vpop.f32.mrb[0].mxu0
        %v2474 = vadd.f32 %v1865, %v2473
        %v2475 = vpop.f32.mrb[0].mxu0
        %2476 = vmatprep.mubr.bf16.mxu0 0
        %2477 = vmatmul.mubr.bf16.gmra.mrb[0].mxu0 %v1385
        %v2478 = vpop.f32.mrb[0].mxu0
        %v2479 = vadd.f32 %v1870, %v2478
        %v2480 = vpop.f32.mrb[0].mxu0
        %v2481 = vpop.f32.mrb[0].mxu0
        %v2482 = vadd.f32 %v1873, %v2481
        %v2483 = vpop.f32.mrb[0].mxu0
        %2484 = vmatprep.mubr.bf16.mxu0 0
        %2485 = vmatmul.mubr.bf16.gmra.mrb[0].mxu0 %v1388
        %v2486 = vpop.f32.mrb[0].mxu0
        %v2487 = vadd.f32 %v1878, %v2486
        %v2488 = vpop.f32.mrb[0].mxu0
        %v2489 = vpop.f32.mrb[0].mxu0
        %v2490 = vadd.f32 %v1881, %v2489
        %v2491 = vpop.f32.mrb[0].mxu0
        %2492 = vmatprep.mubr.bf16.mxu0 0
        %2493 = vmatmul.mubr.bf16.gmra.mrb[0].mxu0 %v1391
        %v2494 = vpop.f32.mrb[0].mxu0
        %v2495 = vadd.f32 %v1886, %v2494
        %v2496 = vpop.f32.mrb[0].mxu0
        %v2497 = vpop.f32.mrb[0].mxu0
        %v2498 = vadd.f32 %v1889, %v2497
        %v2499 = vpop.f32.mrb[0].mxu0
        %2500 = vmatprep.mubr.bf16.mxu0 0
        %2501 = vmatmul.mubr.bf16.gmra.mrb[0].mxu0 %v1394
        %v2502 = vpop.f32.mrb[0].mxu0
        %v2503 = vadd.f32 %v1894, %v2502
        %v2504 = vpop.f32.mrb[0].mxu0
        %v2505 = vpop.f32.mrb[0].mxu0
        %v2506 = vadd.f32 %v1897, %v2505
        %v2507 = vpop.f32.mrb[0].mxu0
        %2508 = vmatprep.mubr.bf16.mxu0 0
        %2509 = vmatmul.mubr.bf16.gmra.mrb[0].mxu0 %v1397
        %v2510 = vpop.f32.mrb[0].mxu0
        %v2511 = vadd.f32 %v1902, %v2510
        %v2512 = vpop.f32.mrb[0].mxu0
        %v2513 = vpop.f32.mrb[0].mxu0
        %v2514 = vadd.f32 %v1905, %v2513
        %v2515 = vpop.f32.mrb[0].mxu0
        %2516 = vmatprep.mubr.bf16.mxu0 0
        %2517 = vmatmul.mubr.bf16.gmra.mrb[0].mxu0 %v1400
        %v2518 = vpop.f32.mrb[0].mxu0
        %v2519 = vadd.f32 %v1910, %v2518
        %v2520 = vpop.f32.mrb[0].mxu0
        %v2521 = vpop.f32.mrb[0].mxu0
        %v2522 = vadd.f32 %v1913, %v2521
        %v2523 = vpop.f32.mrb[0].mxu0
        %2524 = vmatprep.mubr.bf16.mxu0 0
        %2525 = vmatmul.mubr.bf16.gmra.mrb[0].mxu0 %v1403
        %v2526 = vpop.f32.mrb[0].mxu0
        %v2527 = vadd.f32 %v1918, %v2526
        %v2528 = vpop.f32.mrb[0].mxu0
        %v2529 = vpop.f32.mrb[0].mxu0
        %v2530 = vadd.f32 %v1921, %v2529
        %v2531 = vpop.f32.mrb[0].mxu0
        %2532 = vmatprep.mubr.bf16.mxu0 0
        %2533 = vmatmul.mubr.bf16.gmra.mrb[0].mxu0 %v1406
        %v2534 = vpop.f32.mrb[0].mxu0
        %v2535 = vadd.f32 %v1926, %v2534
        %v2536 = vpop.f32.mrb[0].mxu0
        %v2537 = vpop.f32.mrb[0].mxu0
        %v2538 = vadd.f32 %v1929, %v2537
        %v2539 = vpop.f32.mrb[0].mxu0
        %2540 = vmatprep.mubr.bf16.mxu0 0
        %2541 = vmatmul.mubr.bf16.gmra.mrb[0].mxu0 %v1409
        %v2542 = vpop.f32.mrb[0].mxu0
        %v2543 = vadd.f32 %v1934, %v2542
        %v2544 = vpop.f32.mrb[0].mxu0
        %v2545 = vpop.f32.mrb[0].mxu0
        %v2546 = vadd.f32 %v1937, %v2545
        %v2547 = vpop.f32.mrb[0].mxu0
        %2548 = vmatprep.mubr.bf16.mxu0 0
        %2549 = vmatmul.mubr.bf16.gmra.mrb[0].mxu0 %v1412
        %v2550 = vpop.f32.mrb[0].mxu0
        %v2551 = vadd.f32 %v1942, %v2550
        %v2552 = vpop.f32.mrb[0].mxu0
        %v2553 = vpop.f32.mrb[0].mxu0
        %v2554 = vadd.f32 %v1945, %v2553
        %v2555 = vpop.f32.mrb[0].mxu0
        %2556 = vmatprep.mubr.bf16.mxu0 0
        %2557 = vmatmul.mubr.bf16.gmra.mrb[0].mxu0 %v1415
        %v2558 = vpop.f32.mrb[0].mxu0
        %v2559 = vadd.f32 %v1950, %v2558
        %v2560 = vpop.f32.mrb[0].mxu0
        %v2561 = vpop.f32.mrb[0].mxu0
        %v2562 = vadd.f32 %v1953, %v2561
        %v2563 = vpop.f32.mrb[0].mxu0
        %2564 = vmatprep.mubr.bf16.mxu0 0
        %2565 = vmatmul.mubr.bf16.gmra.mrb[0].mxu0 %v1418
        %v2566 = vpop.f32.mrb[0].mxu0
        %v2567 = vadd.f32 %v1958, %v2566
        %v2568 = vpop.f32.mrb[0].mxu0
        %v2569 = vpop.f32.mrb[0].mxu0
        %v2570 = vadd.f32 %v1961, %v2569
        %v2571 = vpop.f32.mrb[0].mxu0
        %2572 = vmatprep.mubr.bf16.mxu0 0
        %2573 = vmatmul.mubr.bf16.gmra.mrb[0].mxu0 %v1421
        %v2574 = vpop.f32.mrb[0].mxu0
        %v2575 = vadd.f32 %v1966, %v2574
        %v2576 = vpop.f32.mrb[0].mxu0
        %v2577 = vpop.f32.mrb[0].mxu0
        %v2578 = vadd.f32 %v1969, %v2577
        %v2579 = vpop.f32.mrb[0].mxu0
        %2580 = vmatprep.mubr.bf16.mxu0 0
        %2581 = vmatmul.mubr.bf16.gmra.mrb[0].mxu0 %v1424
        %v2582 = vpop.f32.mrb[0].mxu0
        %v2583 = vadd.f32 %v1974, %v2582
        %v2584 = vpop.f32.mrb[0].mxu0
        %v2585 = vpop.f32.mrb[0].mxu0
        %v2586 = vadd.f32 %v1977, %v2585
        %v2587 = vpop.f32.mrb[0].mxu0
        %2588 = vmatprep.mubr.bf16.mxu0 0
        %2589 = vmatmul.mubr.bf16.gmra.mrb[0].mxu0 %v1427
        %v2590 = vpop.f32.mrb[0].mxu0
        %v2591 = vadd.f32 %v1982, %v2590
        %v2592 = vpop.f32.mrb[0].mxu0
        %v2593 = vpop.f32.mrb[0].mxu0
        %v2594 = vadd.f32 %v1985, %v2593
        %v2595 = vpop.f32.mrb[0].mxu0
        %2596 = vmatprep.mubr.bf16.mxu0 0
        %2597 = vmatmul.mubr.bf16.gmra.mrb[0].mxu0 %v1430
        %v2598 = vpop.f32.mrb[0].mxu0
        %v2599 = vadd.f32 %v1990, %v2598
        %v2600 = vpop.f32.mrb[0].mxu0
        %v2601 = vpop.f32.mrb[0].mxu0
        %v2602 = vadd.f32 %v1993, %v2601
        %v2603 = vpop.f32.mrb[0].mxu0
        %2604 = vmatprep.mubr.bf16.mxu0 0
        %2605 = vmatmul.mubr.bf16.gmra.mrb[0].mxu0 %v1433
        %v2606 = vpop.f32.mrb[0].mxu0
        %v2607 = vadd.f32 %v1998, %v2606
        %v2608 = vpop.f32.mrb[0].mxu0
        %v2609 = vpop.f32.mrb[0].mxu0
        %v2610 = vadd.f32 %v2001, %v2609
        %v2611 = vpop.f32.mrb[0].mxu0
        %2612 = vmatprep.mubr.bf16.mxu0 0
        %2613 = vmatmul.mubr.bf16.gmra.mrb[0].mxu0 %v1436
        %v2614 = vpop.f32.mrb[0].mxu0
        %v2615 = vadd.f32 %v2006, %v2614
        %v2616 = vpop.f32.mrb[0].mxu0
        %v2617 = vpop.f32.mrb[0].mxu0
        %v2618 = vadd.f32 %v2009, %v2617
        %v2619 = vpop.f32.mrb[0].mxu0
        %2620 = vmatprep.mubr.bf16.mxu0 0
        %2621 = vmatmul.mubr.bf16.gmra.mrb[0].mxu0 %v1439
        %v2622 = vpop.f32.mrb[0].mxu0
        %v2623 = vadd.f32 %v2014, %v2622
        %v2624 = vpop.f32.mrb[0].mxu0
        %v2625 = vpop.f32.mrb[0].mxu0
        %v2626 = vadd.f32 %v2017, %v2625
        %v2627 = vpop.f32.mrb[0].mxu0
        %2628 = vmatprep.mubr.bf16.mxu0 0
        %2629 = vmatmul.mubr.bf16.gmra.mrb[0].mxu0 %v1442
        %v2630 = vpop.f32.mrb[0].mxu0
        %v2631 = vadd.f32 %v2022, %v2630
        %v2632 = vpop.f32.mrb[0].mxu0
        %v2633 = vpop.f32.mrb[0].mxu0
        %v2634 = vadd.f32 %v2025, %v2633
        %v2635 = vpop.f32.mrb[0].mxu0
        %2636 = vmatprep.mubr.bf16.mxu0 0
        %2637 = vmatmul.mubr.bf16.gmra.mrb[0].mxu0 %v1445
        %v2638 = vpop.f32.mrb[0].mxu0
        %v2639 = vadd.f32 %v2030, %v2638
        %v2640 = vpop.f32.mrb[0].mxu0
        %v2641 = vpop.f32.mrb[0].mxu0
        %v2642 = vadd.f32 %v2033, %v2641
        %v2643 = vpop.f32.mrb[0].mxu0
        %2644 = vmatprep.mubr.bf16.mxu0 0
        %2645 = vmatmul.mubr.bf16.gmra.mrb[0].mxu0 %v1448
        %v2646 = vpop.f32.mrb[0].mxu0
        %v2647 = vadd.f32 %v2038, %v2646
        %v2648 = vpop.f32.mrb[0].mxu0
        %v2649 = vpop.f32.mrb[0].mxu0
        %v2650 = vadd.f32 %v2041, %v2649
        %v2651 = vpop.f32.mrb[0].mxu0
        %2652 = vmatprep.mubr.bf16.mxu0 0
        %2653 = vmatmul.mubr.bf16.gmra.mrb[0].mxu0 %v1451
        %v2654 = vpop.f32.mrb[0].mxu0
        %v2655 = vadd.f32 %v2046, %v2654
        %v2656 = vpop.f32.mrb[0].mxu0
        %v2657 = vpop.f32.mrb[0].mxu0
        %v2658 = vadd.f32 %v2049, %v2657
        %v2659 = vpop.f32.mrb[0].mxu0
        %2660 = vmatprep.mubr.bf16.mxu0 0
        %2661 = vmatmul.mubr.bf16.gmra.mrb[0].mxu0 %v1454
        %v2662 = vpop.f32.mrb[0].mxu0
        %v2663 = vadd.f32 %v2054, %v2662
        %v2664 = vpop.f32.mrb[0].mxu0
        %v2665 = vpop.f32.mrb[0].mxu0
        %v2666 = vadd.f32 %v2057, %v2665
        %v2667 = vpop.f32.mrb[0].mxu0
        %2668 = vmatprep.mubr.bf16.mxu0 0
        %2669 = vmatmul.mubr.bf16.gmra.mrb[0].mxu0 %v1457
        %v2670 = vpop.f32.mrb[0].mxu0
        %v2671 = vadd.f32 %v2062, %v2670
        %v2672 = vpop.f32.mrb[0].mxu0
        %v2673 = vpop.f32.mrb[0].mxu0
        %v2674 = vadd.f32 %v2065, %v2673
        %v2675 = vpop.f32.mrb[0].mxu0
        %2676 = vmatprep.mubr.bf16.mxu0 0
        %2677 = vmatmul.mubr.bf16.gmra.mrb[0].mxu0 %v1460
        %v2678 = vpop.f32.mrb[0].mxu0
        %v2679 = vadd.f32 %v2070, %v2678
        %v2680 = vpop.f32.mrb[0].mxu0
        %v2681 = vpop.f32.mrb[0].mxu0
        %v2682 = vadd.f32 %v2073, %v2681
        %v2683 = vpop.f32.mrb[0].mxu0
        %2684 = vmatprep.mubr.bf16.mxu0 0
        %2685 = vmatmul.mubr.bf16.gmra.mrb[0].mxu0 %v1463
        %v2686 = vpop.f32.mrb[0].mxu0
        %v2687 = vadd.f32 %v2078, %v2686
        %v2688 = vpop.f32.mrb[0].mxu0
        %v2689 = vpop.f32.mrb[0].mxu0
        %v2690 = vadd.f32 %v2081, %v2689
        %v2691 = vpop.f32.mrb[0].mxu0
        %2692 = vmatprep.mubr.bf16.mxu0 0
        %2693 = vmatmul.mubr.bf16.gmra.mrb[0].mxu0 %v1466
        %v2694 = vpop.f32.mrb[0].mxu0
        %v2695 = vadd.f32 %v2086, %v2694
        %v2696 = vpop.f32.mrb[0].mxu0
        %v2697 = vpop.f32.mrb[0].mxu0
        %v2698 = vadd.f32 %v2089, %v2697
        %v2699 = vpop.f32.mrb[0].mxu0
        %2700 = vmatprep.mubr.bf16.mxu0 0
        %2701 = vmatmul.mubr.bf16.gmra.mrb[0].mxu0 %v1469
        %v2702 = vpop.f32.mrb[0].mxu0
        %v2703 = vadd.f32 %v2094, %v2702
        %v2704 = vpop.f32.mrb[0].mxu0
        %v2705 = vpop.f32.mrb[0].mxu0
        %v2706 = vadd.f32 %v2097, %v2705
        %v2707 = vpop.f32.mrb[0].mxu0
        %2708 = vmatprep.mubr.bf16.mxu0 0
        %2709 = vmatmul.mubr.bf16.gmra.mrb[0].mxu0 %v1472
        %v2710 = vpop.f32.mrb[0].mxu0
        %v2711 = vadd.f32 %v2102, %v2710
        %v2712 = vpop.f32.mrb[0].mxu0
        %v2713 = vpop.f32.mrb[0].mxu0
        %v2714 = vadd.f32 %v2105, %v2713
        %v2715 = vpop.f32.mrb[0].mxu0
        %2716 = vmatprep.mubr.bf16.mxu0 0
        %2717 = vmatmul.mubr.bf16.gmra.mrb[0].mxu0 %v1475
        %v2718 = vpop.f32.mrb[0].mxu0
        %v2719 = vadd.f32 %v2110, %v2718
        %v2720 = vpop.f32.mrb[0].mxu0
        %v2721 = vpop.f32.mrb[0].mxu0
        %v2722 = vadd.f32 %v2113, %v2721
        %v2723 = vpop.f32.mrb[0].mxu0
        %2724 = vmatprep.mubr.bf16.mxu0 0
        %2725 = vmatmul.mubr.bf16.gmra.mrb[0].mxu0 %v1478
        %v2726 = vpop.f32.mrb[0].mxu0
        %v2727 = vadd.f32 %v2118, %v2726
        %v2728 = vpop.f32.mrb[0].mxu0
        %v2729 = vpop.f32.mrb[0].mxu0
        %v2730 = vadd.f32 %v2121, %v2729
        %v2731 = vpop.f32.mrb[0].mxu0
        %2732 = vmatprep.mubr.bf16.mxu0 0
        %2733 = vmatmul.mubr.bf16.gmra.mrb[0].mxu0 %v1481
        %v2734 = vpop.f32.mrb[0].mxu0
        %v2735 = vadd.f32 %v2126, %v2734
        %v2736 = vpop.f32.mrb[0].mxu0
        %v2737 = vpop.f32.mrb[0].mxu0
        %v2738 = vadd.f32 %v2129, %v2737
        %v2739 = vpop.f32.mrb[0].mxu0
        %2740 = vmatprep.mubr.bf16.mxu0 0
        %2741 = vmatmul.mubr.bf16.gmra.mrb[0].mxu0 %v1484
        %v2742 = vpop.f32.mrb[0].mxu0
        %v2743 = vadd.f32 %v2134, %v2742
        %v2744 = vpop.f32.mrb[0].mxu0
        %v2745 = vpop.f32.mrb[0].mxu0
        %v2746 = vadd.f32 %v2137, %v2745
        %v2747 = vpop.f32.mrb[0].mxu0
        %2748 = vmatprep.mubr.bf16.mxu0 0
        %2749 = vmatmul.mubr.bf16.gmra.mrb[0].mxu0 %v1487
        %v2750 = vpop.f32.mrb[0].mxu0
        %v2751 = vadd.f32 %v2142, %v2750
        %v2752 = vpop.f32.mrb[0].mxu0
        %v2753 = vpop.f32.mrb[0].mxu0
        %v2754 = vadd.f32 %v2145, %v2753
        %v2755 = vpop.f32.mrb[0].mxu0
        %2756 = vmatprep.mubr.bf16.mxu0 0
        %2757 = vmatmul.mubr.bf16.gmra.mrb[0].mxu0 %v1490
        %v2758 = vpop.f32.mrb[0].mxu0
        %v2759 = vadd.f32 %v2150, %v2758
        %v2760 = vpop.f32.mrb[0].mxu0
        %v2761 = vpop.f32.mrb[0].mxu0
        %v2762 = vadd.f32 %v2153, %v2761
        %v2763 = vpop.f32.mrb[0].mxu0
        %2764 = vmatprep.mubr.bf16.mxu0 0
        %2765 = vmatmul.mubr.bf16.gmra.mrb[0].mxu0 %v1493
        %v2766 = vpop.f32.mrb[0].mxu0
        %v2767 = vadd.f32 %v2158, %v2766
        %v2768 = vpop.f32.mrb[0].mxu0
        %v2769 = vpop.f32.mrb[0].mxu0
        %v2770 = vadd.f32 %v2161, %v2769
        %v2771 = vpop.f32.mrb[0].mxu0
        %2772 = vmatprep.mubr.bf16.mxu0 0
        %2773 = vmatmul.mubr.bf16.gmra.mrb[0].mxu0 %v1496
        %v2774 = vpop.f32.mrb[0].mxu0
        %v2775 = vadd.f32 %v2166, %v2774
        %v2776 = vpop.f32.mrb[0].mxu0
        %v2777 = vpop.f32.mrb[0].mxu0
        %v2778 = vadd.f32 %v2169, %v2777
        %v2779 = vpop.f32.mrb[0].mxu0
        %2780 = vmatprep.mubr.bf16.mxu0 0
        %2781 = vmatmul.mubr.bf16.gmra.mrb[0].mxu0 %v1499
        %v2782 = vpop.f32.mrb[0].mxu0
        %v2783 = vadd.f32 %v2174, %v2782
        %v2784 = vpop.f32.mrb[0].mxu0
        %v2785 = vpop.f32.mrb[0].mxu0
        %v2786 = vadd.f32 %v2177, %v2785
        %v2787 = vpop.f32.mrb[0].mxu0
        %2788 = vmatprep.mubr.bf16.mxu0 0
        %2789 = vmatmul.mubr.bf16.gmra.mrb[0].mxu0 %v1502
        %v2790 = vpop.f32.mrb[0].mxu0
        %v2791 = vadd.f32 %v2182, %v2790
        %v2792 = vpop.f32.mrb[0].mxu0
        %v2793 = vpop.f32.mrb[0].mxu0
        %v2794 = vadd.f32 %v2185, %v2793
        %v2795 = vpop.f32.mrb[0].mxu0
        %2796 = vmatprep.mubr.bf16.mxu0 0
        %2797 = vmatmul.mubr.bf16.gmra.mrb[0].mxu0 %v1505
        %v2798 = vpop.f32.mrb[0].mxu0
        %v2799 = vadd.f32 %v2190, %v2798
        %v2800 = vpop.f32.mrb[0].mxu0
        %v2801 = vpop.f32.mrb[0].mxu0
        %v2802 = vadd.f32 %v2193, %v2801
        %v2803 = vpop.f32.mrb[0].mxu0
        %2804 = vmatprep.mubr.bf16.mxu0 0
        %2805 = vmatmul.mubr.bf16.gmra.mrb[0].mxu0 %v1508
        %v2806 = vpop.f32.mrb[0].mxu0
        %v2807 = vadd.f32 %v2198, %v2806
        %v2808 = vpop.f32.mrb[0].mxu0
        %v2809 = vpop.f32.mrb[0].mxu0
        %v2810 = vadd.f32 %v2201, %v2809
        %v2811 = vpop.f32.mrb[0].mxu0
        %2812 = vmatprep.mubr.bf16.mxu0 0
        %2813 = vmatmul.mubr.bf16.gmra.mrb[0].mxu0 %v1511
        %v2814 = vpop.f32.mrb[0].mxu0
        %v2815 = vadd.f32 %v2206, %v2814
        %v2816 = vpop.f32.mrb[0].mxu0
        %v2817 = vpop.f32.mrb[0].mxu0
        %v2818 = vadd.f32 %v2209, %v2817
        %v2819 = vpop.f32.mrb[0].mxu0
        %2820 = vmatprep.mubr.bf16.mxu0 0
        %2821 = vmatmul.mubr.bf16.gmra.mrb[0].mxu0 %v1514
        %v2822 = vpop.f32.mrb[0].mxu0
        %v2823 = vadd.f32 %v2214, %v2822
        %v2824 = vpop.f32.mrb[0].mxu0
        %v2825 = vpop.f32.mrb[0].mxu0
        %v2826 = vadd.f32 %v2217, %v2825
        %v2827 = vpop.f32.mrb[0].mxu0
        %2828 = vmatprep.mubr.bf16.mxu0 0
        %2829 = vmatmul.mubr.bf16.gmra.mrb[0].mxu0 %v1517
        %v2830 = vpop.f32.mrb[0].mxu0
        %v2831 = vadd.f32 %v2222, %v2830
        %v2832 = vpop.f32.mrb[0].mxu0
        %v2833 = vpop.f32.mrb[0].mxu0
        %v2834 = vadd.f32 %v2225, %v2833
        %v2835 = vpop.f32.mrb[0].mxu0
        %2836 = vmatprep.mubr.bf16.mxu0 0
        %2837 = vmatmul.mubr.bf16.gmra.mrb[0].mxu0 %v1520
        %v2838 = vpop.f32.mrb[0].mxu0
        %v2839 = vadd.f32 %v2230, %v2838
        %v2840 = vpop.f32.mrb[0].mxu0
        %v2841 = vpop.f32.mrb[0].mxu0
        %v2842 = vadd.f32 %v2233, %v2841
        %v2843 = vpop.f32.mrb[0].mxu0
        %2844 = vmatprep.mubr.bf16.mxu0 0
        %2845 = vmatmul.mubr.bf16.gmra.mrb[0].mxu0 %v1523
        %v2846 = vpop.f32.mrb[0].mxu0
        %v2847 = vadd.f32 %v2238, %v2846
        %v2848 = vpop.f32.mrb[0].mxu0
        %v2849 = vpop.f32.mrb[0].mxu0
        %v2850 = vadd.f32 %v2241, %v2849
        %v2851 = vpop.f32.mrb[0].mxu0
        %2852 = vmatprep.mubr.bf16.mxu0 0
        %2853 = vmatmul.mubr.bf16.gmra.mrb[0].mxu0 %v1526
        %v2854 = vpop.f32.mrb[0].mxu0
        %v2855 = vadd.f32 %v2246, %v2854
        %v2856 = vpop.f32.mrb[0].mxu0
        %v2857 = vpop.f32.mrb[0].mxu0
        %v2858 = vadd.f32 %v2249, %v2857
        %v2859 = vpop.f32.mrb[0].mxu0
        %2860 = vmatprep.mubr.bf16.mxu0 0
        %2861 = vmatmul.mubr.bf16.gmra.mrb[0].mxu0 %v1529
        %v2862 = vpop.f32.mrb[0].mxu0
        %v2863 = vadd.f32 %v2254, %v2862
        %v2864 = vpop.f32.mrb[0].mxu0
        %v2865 = vpop.f32.mrb[0].mxu0
        %v2866 = vadd.f32 %v2257, %v2865
        %v2867 = vpop.f32.mrb[0].mxu0
        %2868 = vmatprep.mubr.bf16.mxu0 0
        %2869 = vmatmul.mubr.bf16.gmra.mrb[0].mxu0 %v1532
        %v2870 = vpop.f32.mrb[0].mxu0
        %v2871 = vadd.f32 %v2262, %v2870
        %v2872 = vpop.f32.mrb[0].mxu0
        %v2873 = vpop.f32.mrb[0].mxu0
        %v2874 = vadd.f32 %v2265, %v2873
        %v2875 = vpop.f32.mrb[0].mxu0
        %2876 = vmatprep.mubr.bf16.mxu0 0
        %2877 = vmatmul.mubr.bf16.gmra.mrb[0].mxu0 %v1535
        %v2878 = vpop.f32.mrb[0].mxu0
        %v2879 = vadd.f32 %v2270, %v2878
        %v2880 = vpop.f32.mrb[0].mxu0
        %v2881 = vpop.f32.mrb[0].mxu0
        %v2882 = vadd.f32 %v2273, %v2881
        %v2883 = vpop.f32.mrb[0].mxu0
        %2884 = vmatprep.mubr.bf16.mxu0 0
        %2885 = vmatmul.mubr.bf16.gmra.mrb[0].mxu0 %v1538
        %v2886 = vpop.f32.mrb[0].mxu0
        %v2887 = vadd.f32 %v2278, %v2886
        %v2888 = vpop.f32.mrb[0].mxu0
        %v2889 = vpop.f32.mrb[0].mxu0
        %v2890 = vadd.f32 %v2281, %v2889
        %v2891 = vpop.f32.mrb[0].mxu0
        %2892 = vmatprep.mubr.bf16.mxu0 0
        %2893 = vmatmul.mubr.bf16.gmra.mrb[0].mxu0 %v1541
        %v2894 = vpop.f32.mrb[0].mxu0
        %v2895 = vadd.f32 %v2286, %v2894
        %v2896 = vpop.f32.mrb[0].mxu0
        %v2897 = vpop.f32.mrb[0].mxu0
        %v2898 = vadd.f32 %v2289, %v2897
        %v2899 = vpop.f32.mrb[0].mxu0
        %2900 = vmatprep.mubr.bf16.mxu0 0
        %2901 = vmatmul.mubr.bf16.gmra.mrb[0].mxu0 %v1544
        %v2902 = vpop.f32.mrb[0].mxu0
        %v2903 = vadd.f32 %v2294, %v2902
        %v2904 = vpop.f32.mrb[0].mxu0
        %v2905 = vpop.f32.mrb[0].mxu0
        %v2906 = vadd.f32 %v2297, %v2905
        %v2907 = vpop.f32.mrb[0].mxu0
        %2908 = vmatprep.mubr.bf16.mxu0 0
        %2909 = vmatmul.mubr.bf16.gmra.mrb[0].mxu0 %v1547
        %v2910 = vpop.f32.mrb[0].mxu0
        %v2911 = vadd.f32 %v2302, %v2910
        %v2912 = vpop.f32.mrb[0].mxu0
        %v2913 = vpop.f32.mrb[0].mxu0
        %v2914 = vadd.f32 %v2305, %v2913
        %v2915 = vpop.f32.mrb[0].mxu0
        %2916 = vmatprep.mubr.bf16.mxu0 0
        %2917 = vmatmul.mubr.bf16.gmra.mrb[0].mxu0 %v1550
        %v2918 = vpop.f32.mrb[0].mxu0
        %v2919 = vadd.f32 %v2310, %v2918
        %v2920 = vpop.f32.mrb[0].mxu0
        %v2921 = vpop.f32.mrb[0].mxu0
        %v2922 = vadd.f32 %v2313, %v2921
        %v2923 = vpop.f32.mrb[0].mxu0
        %2924 = vmatprep.mubr.bf16.mxu0 0
        %2925 = vmatmul.mubr.bf16.gmra.mrb[0].mxu0 %v1553
        %v2926 = vpop.f32.mrb[0].mxu0
        %v2927 = vadd.f32 %v2318, %v2926
        %v2928 = vpop.f32.mrb[0].mxu0
        %v2929 = vpop.f32.mrb[0].mxu0
        %v2930 = vadd.f32 %v2321, %v2929
        %v2931 = vpop.f32.mrb[0].mxu0
        %2932 = vmatprep.mubr.bf16.mxu0 0
        %2933 = vmatmul.mubr.bf16.gmra.mrb[0].mxu0 %v1556
        %v2934 = vpop.f32.mrb[0].mxu0
        %v2935 = vadd.f32 %v2326, %v2934
        %v2936 = vpop.f32.mrb[0].mxu0
        %v2937 = vpop.f32.mrb[0].mxu0
        %v2938 = vadd.f32 %v2329, %v2937
        %v2939 = vpop.f32.mrb[0].mxu0
        %2940 = vmatprep.mubr.bf16.mxu0 0
        %2941 = vmatmul.mubr.bf16.gmra.mrb[0].mxu0 %v1559
        %v2942 = vpop.f32.mrb[0].mxu0
        %v2943 = vadd.f32 %v2334, %v2942
        %v2944 = vpop.f32.mrb[0].mxu0
        %v2945 = vpop.f32.mrb[0].mxu0
        %v2946 = vadd.f32 %v2337, %v2945
        %v2947 = vpop.f32.mrb[0].mxu0
        %2948 = vmatprep.mubr.bf16.mxu0 0
        %2949 = vmatmul.mubr.bf16.gmra.mrb[0].mxu0 %v1562
        %v2950 = vpop.f32.mrb[0].mxu0
        %v2951 = vadd.f32 %v2342, %v2950
        %v2952 = vpop.f32.mrb[0].mxu0
        %v2953 = vpop.f32.mrb[0].mxu0
        %v2954 = vadd.f32 %v2345, %v2953
        %v2955 = vpop.f32.mrb[0].mxu0
        %2956 = vmatprep.mubr.bf16.mxu0 0
        %2957 = vmatmul.mubr.bf16.gmra.mrb[0].mxu0 %v1565
        %v2958 = vpop.f32.mrb[0].mxu0
        %v2959 = vadd.f32 %v2350, %v2958
        %v2960 = vpop.f32.mrb[0].mxu0
        %v2961 = vpop.f32.mrb[0].mxu0
        %v2962 = vadd.f32 %v2353, %v2961
        %v2963 = vpop.f32.mrb[0].mxu0
        %2964 = vmatprep.mubr.bf16.mxu0 0
        %2965 = vmatmul.mubr.bf16.gmra.mrb[0].mxu0 %v1568
        %v2966 = vpop.f32.mrb[0].mxu0
        %v2967 = vadd.f32 %v2358, %v2966
        %v2968 = vpop.f32.mrb[0].mxu0
        %v2969 = vpop.f32.mrb[0].mxu0
        %v2970 = vadd.f32 %v2361, %v2969
        %v2971 = vpop.f32.mrb[0].mxu0
        %2972 = vmatprep.mubr.bf16.mxu0 0
        %2973 = vmatmul.mubr.bf16.gmra.mrb[0].mxu0 %v1571
        %v2974 = vpop.f32.mrb[0].mxu0
        %v2975 = vadd.f32 %v2366, %v2974
        %v2976 = vpop.f32.mrb[0].mxu0
        %v2977 = vpop.f32.mrb[0].mxu0
        %v2978 = vadd.f32 %v2369, %v2977
        %v2979 = vpop.f32.mrb[0].mxu0
        %2980 = vmatprep.mubr.bf16.mxu0 0
        %2981 = vmatmul.mubr.bf16.gmra.mrb[0].mxu0 %v1574
        %v2982 = vpop.f32.mrb[0].mxu0
        %v2983 = vadd.f32 %v2374, %v2982
        %v2984 = vpop.f32.mrb[0].mxu0
        %v2985 = vpop.f32.mrb[0].mxu0
        %v2986 = vadd.f32 %v2377, %v2985
        %v2987 = vpop.f32.mrb[0].mxu0
        %2988 = vmatprep.mubr.bf16.mxu0 0
        %2989 = vmatmul.mubr.bf16.gmra.mrb[0].mxu0 %v1577
        %v2990 = vpop.f32.mrb[0].mxu0
        %v2991 = vadd.f32 %v2382, %v2990
        %v2992 = vpop.f32.mrb[0].mxu0
        %v2993 = vpop.f32.mrb[0].mxu0
        %v2994 = vadd.f32 %v2385, %v2993
        %v2995 = vpop.f32.mrb[0].mxu0
        %2996 = vmatprep.mubr.bf16.mxu0 0
        %2997 = vmatmul.mubr.bf16.gmra.mrb[0].mxu0 %v1580
        %v2998 = vpop.f32.mrb[0].mxu0
        %v2999 = vadd.f32 %v2390, %v2998
        %v3000 = vpop.f32.mrb[0].mxu0
        %v3001 = vpop.f32.mrb[0].mxu0
        %v3002 = vadd.f32 %v2393, %v3001
        %v3003 = vpop.f32.mrb[0].mxu0
        %3004 = vmatprep.mubr.bf16.mxu0 0
        %3005 = vmatmul.mubr.bf16.gmra.mrb[0].mxu0 %v1583
        %v3006 = vpop.f32.mrb[0].mxu0
        %v3007 = vadd.f32 %v2398, %v3006
        %v3008 = vpop.f32.mrb[0].mxu0
        %v3009 = vpop.f32.mrb[0].mxu0
        %v3010 = vadd.f32 %v2401, %v3009
        %v3011 = vpop.f32.mrb[0].mxu0
        %3012 = vmatprep.mubr.bf16.mxu0 0
        %3013 = vmatmul.mubr.bf16.gmra.mrb[0].mxu0 %v1586
        %v3014 = vpop.f32.mrb[0].mxu0
        %v3015 = vadd.f32 %v2406, %v3014
        %v3016 = vpop.f32.mrb[0].mxu0
        %v3017 = vpop.f32.mrb[0].mxu0
        %v3018 = vadd.f32 %v2409, %v3017
        %v3019 = vpop.f32.mrb[0].mxu0
        %3020 = vdwg.mxu0
        %vm3021 = vcmask 400384
        %3022 = vst.msk [vmem:[%s192] sm:$0xff] %vm3021, %v2447
        %3023 = vst.msk [vmem:[%s192 + $0x8] sm:$0xff] %vm3021, %v2450
        %3024 = vst.msk [vmem:[%s192 + $0x10] sm:$0xff] %vm3021, %v2455
        %3025 = vst.msk [vmem:[%s192 + $0x18] sm:$0xff] %vm3021, %v2458
        %3026 = vst.msk [vmem:[%s192 + $0x20] sm:$0xff] %vm3021, %v2463
        %3027 = vst.msk [vmem:[%s192 + $0x28] sm:$0xff] %vm3021, %v2466
        %3028 = vst.msk [vmem:[%s192 + $0x30] sm:$0xff] %vm3021, %v2471
        %3029 = vst.msk [vmem:[%s192 + $0x38] sm:$0xff] %vm3021, %v2474
        %3030 = vst.msk [vmem:[%s192 + $0x40] sm:$0xff] %vm3021, %v2479
        %3031 = vst.msk [vmem:[%s192 + $0x48] sm:$0xff] %vm3021, %v2482
        %3032 = vst.msk [vmem:[%s192 + $0x50] sm:$0xff] %vm3021, %v2487
        %3033 = vst.msk [vmem:[%s192 + $0x58] sm:$0xff] %vm3021, %v2490
        %3034 = vst.msk [vmem:[%s192 + $0x60] sm:$0xff] %vm3021, %v2495
        %3035 = vst.msk [vmem:[%s192 + $0x68] sm:$0xff] %vm3021, %v2498
        %3036 = vst.msk [vmem:[%s192 + $0x70] sm:$0xff] %vm3021, %v2503
        %3037 = vst.msk [vmem:[%s192 + $0x78] sm:$0xff] %vm3021, %v2506
        %3038 = vst.msk [vmem:[%s192 + $0x80] sm:$0xff] %vm3021, %v2511
        %3039 = vst.msk [vmem:[%s192 + $0x88] sm:$0xff] %vm3021, %v2514
        %3040 = vst.msk [vmem:[%s192 + $0x90] sm:$0xff] %vm3021, %v2519
        %3041 = vst.msk [vmem:[%s192 + $0x98] sm:$0xff] %vm3021, %v2522
        %3042 = vst.msk [vmem:[%s192 + $0xa0] sm:$0xff] %vm3021, %v2527
        %3043 = vst.msk [vmem:[%s192 + $0xa8] sm:$0xff] %vm3021, %v2530
        %3044 = vst.msk [vmem:[%s192 + $0xb0] sm:$0xff] %vm3021, %v2535
        %3045 = vst.msk [vmem:[%s192 + $0xb8] sm:$0xff] %vm3021, %v2538
        %3046 = vst.msk [vmem:[%s192 + $0xc0] sm:$0xff] %vm3021, %v2543
        %3047 = vst.msk [vmem:[%s192 + $0xc8] sm:$0xff] %vm3021, %v2546
        %3048 = vst.msk [vmem:[%s192 + $0xd0] sm:$0xff] %vm3021, %v2551
        %3049 = vst.msk [vmem:[%s192 + $0xd8] sm:$0xff] %vm3021, %v2554
        %3050 = vst.msk [vmem:[%s192 + $0xe0] sm:$0xff] %vm3021, %v2559
        %3051 = vst.msk [vmem:[%s192 + $0xe8] sm:$0xff] %vm3021, %v2562
        %3052 = vst.msk [vmem:[%s192 + $0xf0] sm:$0xff] %vm3021, %v2567
        %3053 = vst.msk [vmem:[%s192 + $0xf8] sm:$0xff] %vm3021, %v2570
        %3054 = vst.msk [vmem:[%s192 + $0x100] sm:$0xff] %vm3021, %v2575
        %3055 = vst.msk [vmem:[%s192 + $0x108] sm:$0xff] %vm3021, %v2578
        %3056 = vst.msk [vmem:[%s192 + $0x110] sm:$0xff] %vm3021, %v2583
        %3057 = vst.msk [vmem:[%s192 + $0x118] sm:$0xff] %vm3021, %v2586
        %3058 = vst.msk [vmem:[%s192 + $0x120] sm:$0xff] %vm3021, %v2591
        %3059 = vst.msk [vmem:[%s192 + $0x128] sm:$0xff] %vm3021, %v2594
        %3060 = vst.msk [vmem:[%s192 + $0x130] sm:$0xff] %vm3021, %v2599
        %3061 = vst.msk [vmem:[%s192 + $0x138] sm:$0xff] %vm3021, %v2602
        %3062 = vst.msk [vmem:[%s192 + $0x140] sm:$0xff] %vm3021, %v2607
        %3063 = vst.msk [vmem:[%s192 + $0x148] sm:$0xff] %vm3021, %v2610
        %3064 = vst.msk [vmem:[%s192 + $0x150] sm:$0xff] %vm3021, %v2615
        %3065 = vst.msk [vmem:[%s192 + $0x158] sm:$0xff] %vm3021, %v2618
        %3066 = vst.msk [vmem:[%s192 + $0x160] sm:$0xff] %vm3021, %v2623
        %3067 = vst.msk [vmem:[%s192 + $0x168] sm:$0xff] %vm3021, %v2626
        %3068 = vst.msk [vmem:[%s192 + $0x170] sm:$0xff] %vm3021, %v2631
        %3069 = vst.msk [vmem:[%s192 + $0x178] sm:$0xff] %vm3021, %v2634
        %3070 = vst.msk [vmem:[%s192 + $0x180] sm:$0xff] %vm3021, %v2639
        %3071 = vst.msk [vmem:[%s192 + $0x188] sm:$0xff] %vm3021, %v2642
        %3072 = vst.msk [vmem:[%s192 + $0x190] sm:$0xff] %vm3021, %v2647
        %3073 = vst.msk [vmem:[%s192 + $0x198] sm:$0xff] %vm3021, %v2650
        %3074 = vst.msk [vmem:[%s192 + $0x1a0] sm:$0xff] %vm3021, %v2655
        %3075 = vst.msk [vmem:[%s192 + $0x1a8] sm:$0xff] %vm3021, %v2658
        %3076 = vst.msk [vmem:[%s192 + $0x1b0] sm:$0xff] %vm3021, %v2663
        %3077 = vst.msk [vmem:[%s192 + $0x1b8] sm:$0xff] %vm3021, %v2666
        %3078 = vst.msk [vmem:[%s192 + $0x1c0] sm:$0xff] %vm3021, %v2671
        %3079 = vst.msk [vmem:[%s192 + $0x1c8] sm:$0xff] %vm3021, %v2674
        %3080 = vst.msk [vmem:[%s192 + $0x1d0] sm:$0xff] %vm3021, %v2679
        %3081 = vst.msk [vmem:[%s192 + $0x1d8] sm:$0xff] %vm3021, %v2682
        %3082 = vst.msk [vmem:[%s192 + $0x1e0] sm:$0xff] %vm3021, %v2687
        %3083 = vst.msk [vmem:[%s192 + $0x1e8] sm:$0xff] %vm3021, %v2690
        %3084 = vst.msk [vmem:[%s192 + $0x1f0] sm:$0xff] %vm3021, %v2695
        %3085 = vst.msk [vmem:[%s192 + $0x1f8] sm:$0xff] %vm3021, %v2698
        %3086 = vst.msk [vmem:[%s192 + $0x200] sm:$0xff] %vm3021, %v2703
        %3087 = vst.msk [vmem:[%s192 + $0x208] sm:$0xff] %vm3021, %v2706
        %3088 = vst.msk [vmem:[%s192 + $0x210] sm:$0xff] %vm3021, %v2711
        %3089 = vst.msk [vmem:[%s192 + $0x218] sm:$0xff] %vm3021, %v2714
        %3090 = vst.msk [vmem:[%s192 + $0x220] sm:$0xff] %vm3021, %v2719
        %3091 = vst.msk [vmem:[%s192 + $0x228] sm:$0xff] %vm3021, %v2722
        %3092 = vst.msk [vmem:[%s192 + $0x230] sm:$0xff] %vm3021, %v2727
        %3093 = vst.msk [vmem:[%s192 + $0x238] sm:$0xff] %vm3021, %v2730
        %3094 = vst.msk [vmem:[%s192 + $0x240] sm:$0xff] %vm3021, %v2735
        %3095 = vst.msk [vmem:[%s192 + $0x248] sm:$0xff] %vm3021, %v2738
        %3096 = vst.msk [vmem:[%s192 + $0x250] sm:$0xff] %vm3021, %v2743
        %3097 = vst.msk [vmem:[%s192 + $0x258] sm:$0xff] %vm3021, %v2746
        %3098 = vst.msk [vmem:[%s192 + $0x260] sm:$0xff] %vm3021, %v2751
        %3099 = vst.msk [vmem:[%s192 + $0x268] sm:$0xff] %vm3021, %v2754
        %3100 = vst.msk [vmem:[%s192 + $0x270] sm:$0xff] %vm3021, %v2759
        %3101 = vst.msk [vmem:[%s192 + $0x278] sm:$0xff] %vm3021, %v2762
        %3102 = vst.msk [vmem:[%s192 + $0x280] sm:$0xff] %vm3021, %v2767
        %3103 = vst.msk [vmem:[%s192 + $0x288] sm:$0xff] %vm3021, %v2770
        %3104 = vst.msk [vmem:[%s192 + $0x290] sm:$0xff] %vm3021, %v2775
        %3105 = vst.msk [vmem:[%s192 + $0x298] sm:$0xff] %vm3021, %v2778
        %3106 = vst.msk [vmem:[%s192 + $0x2a0] sm:$0xff] %vm3021, %v2783
        %3107 = vst.msk [vmem:[%s192 + $0x2a8] sm:$0xff] %vm3021, %v2786
        %3108 = vst.msk [vmem:[%s192 + $0x2b0] sm:$0xff] %vm3021, %v2791
        %3109 = vst.msk [vmem:[%s192 + $0x2b8] sm:$0xff] %vm3021, %v2794
        %3110 = vst.msk [vmem:[%s192 + $0x2c0] sm:$0xff] %vm3021, %v2799
        %3111 = vst.msk [vmem:[%s192 + $0x2c8] sm:$0xff] %vm3021, %v2802
        %3112 = vst.msk [vmem:[%s192 + $0x2d0] sm:$0xff] %vm3021, %v2807
        %3113 = vst.msk [vmem:[%s192 + $0x2d8] sm:$0xff] %vm3021, %v2810
        %3114 = vst.msk [vmem:[%s192 + $0x2e0] sm:$0xff] %vm3021, %v2815
        %3115 = vst.msk [vmem:[%s192 + $0x2e8] sm:$0xff] %vm3021, %v2818
        %3116 = vst.msk [vmem:[%s192 + $0x2f0] sm:$0xff] %vm3021, %v2823
        %3117 = vst.msk [vmem:[%s192 + $0x2f8] sm:$0xff] %vm3021, %v2826
        %3118 = vst.msk [vmem:[%s192 + $0x300] sm:$0xff] %vm3021, %v2831
        %3119 = vst.msk [vmem:[%s192 + $0x308] sm:$0xff] %vm3021, %v2834
        %3120 = vst.msk [vmem:[%s192 + $0x310] sm:$0xff] %vm3021, %v2839
        %3121 = vst.msk [vmem:[%s192 + $0x318] sm:$0xff] %vm3021, %v2842
        %3122 = vst.msk [vmem:[%s192 + $0x320] sm:$0xff] %vm3021, %v2847
        %3123 = vst.msk [vmem:[%s192 + $0x328] sm:$0xff] %vm3021, %v2850
        %3124 = vst.msk [vmem:[%s192 + $0x330] sm:$0xff] %vm3021, %v2855
        %3125 = vst.msk [vmem:[%s192 + $0x338] sm:$0xff] %vm3021, %v2858
        %3126 = vst.msk [vmem:[%s192 + $0x340] sm:$0xff] %vm3021, %v2863
        %3127 = vst.msk [vmem:[%s192 + $0x348] sm:$0xff] %vm3021, %v2866
        %3128 = vst.msk [vmem:[%s192 + $0x350] sm:$0xff] %vm3021, %v2871
        %3129 = vst.msk [vmem:[%s192 + $0x358] sm:$0xff] %vm3021, %v2874
        %3130 = vst.msk [vmem:[%s192 + $0x360] sm:$0xff] %vm3021, %v2879
        %3131 = vst.msk [vmem:[%s192 + $0x368] sm:$0xff] %vm3021, %v2882
        %3132 = vst.msk [vmem:[%s192 + $0x370] sm:$0xff] %vm3021, %v2887
        %3133 = vst.msk [vmem:[%s192 + $0x378] sm:$0xff] %vm3021, %v2890
        %3134 = vst.msk [vmem:[%s192 + $0x380] sm:$0xff] %vm3021, %v2895
        %3135 = vst.msk [vmem:[%s192 + $0x388] sm:$0xff] %vm3021, %v2898
        %3136 = vst.msk [vmem:[%s192 + $0x390] sm:$0xff] %vm3021, %v2903
        %3137 = vst.msk [vmem:[%s192 + $0x398] sm:$0xff] %vm3021, %v2906
        %3138 = vst.msk [vmem:[%s192 + $0x3a0] sm:$0xff] %vm3021, %v2911
        %3139 = vst.msk [vmem:[%s192 + $0x3a8] sm:$0xff] %vm3021, %v2914
        %3140 = vst.msk [vmem:[%s192 + $0x3b0] sm:$0xff] %vm3021, %v2919
        %3141 = vst.msk [vmem:[%s192 + $0x3b8] sm:$0xff] %vm3021, %v2922
        %3142 = vst.msk [vmem:[%s192 + $0x3c0] sm:$0xff] %vm3021, %v2927
        %3143 = vst.msk [vmem:[%s192 + $0x3c8] sm:$0xff] %vm3021, %v2930
        %3144 = vst.msk [vmem:[%s192 + $0x3d0] sm:$0xff] %vm3021, %v2935
        %3145 = vst.msk [vmem:[%s192 + $0x3d8] sm:$0xff] %vm3021, %v2938
        %3146 = vst.msk [vmem:[%s192 + $0x3e0] sm:$0xff] %vm3021, %v2943
        %3147 = vst.msk [vmem:[%s192 + $0x3e8] sm:$0xff] %vm3021, %v2946
        %3148 = vst.msk [vmem:[%s192 + $0x3f0] sm:$0xff] %vm3021, %v2951
        %3149 = vst.msk [vmem:[%s192 + $0x3f8] sm:$0xff] %vm3021, %v2954
        %3150 = vst.msk [vmem:[%s192 + $0x400] sm:$0xff] %vm3021, %v2959
        %3151 = vst.msk [vmem:[%s192 + $0x408] sm:$0xff] %vm3021, %v2962
        %3152 = vst.msk [vmem:[%s192 + $0x410] sm:$0xff] %vm3021, %v2967
        %3153 = vst.msk [vmem:[%s192 + $0x418] sm:$0xff] %vm3021, %v2970
        %3154 = vst.msk [vmem:[%s192 + $0x420] sm:$0xff] %vm3021, %v2975
        %3155 = vst.msk [vmem:[%s192 + $0x428] sm:$0xff] %vm3021, %v2978
        %3156 = vst.msk [vmem:[%s192 + $0x430] sm:$0xff] %vm3021, %v2983
        %3157 = vst.msk [vmem:[%s192 + $0x438] sm:$0xff] %vm3021, %v2986
        %3158 = vst.msk [vmem:[%s192 + $0x440] sm:$0xff] %vm3021, %v2991
        %3159 = vst.msk [vmem:[%s192 + $0x448] sm:$0xff] %vm3021, %v2994
        %3160 = vst.msk [vmem:[%s192 + $0x450] sm:$0xff] %vm3021, %v2999
        %3161 = vst.msk [vmem:[%s192 + $0x458] sm:$0xff] %vm3021, %v3002
        %3162 = vst.msk [vmem:[%s192 + $0x460] sm:$0xff] %vm3021, %v3007
        %3163 = vst.msk [vmem:[%s192 + $0x468] sm:$0xff] %vm3021, %v3010
        %3164 = vst.msk [vmem:[%s192 + $0x470] sm:$0xff] %vm3021, %v3015
        %3165 = vst.msk [vmem:[%s192 + $0x478] sm:$0xff] %vm3021, %v3018
        %s3166 = smul.u32 144, %s17
        %p3167 = scmp.lt.s32.totalorder %s3166, 287
        %s3168 = scalar_select %p3167, %s3166, 287
        %s3169 = smul.addr %s3168, 8
        %s3170 = scalar_lea.vmem %s3, %s3169
        // Predicated region
        $region37: #{module_forward.1} parent=31 // pred_check
          %p3171 = pneg %p103
        $region38: #{module_forward.1} parent=31 // pred_check_branch
          %3173 = sbr.rel (%p3171) target = $region40
        $region39: #{module_forward.1} parent=31 // pred_region
          %s3174 = smul.u32 144, %s17
        $region40: #{module_forward.1} parent=31 // pred_fallthru
          _
      $region32: #{module_forward.1} parent=5 // pred_fallthru
        _
      %p3175 = scmp.le.s32.totalorder 2, %s12
      // Predicated region
      $region41: #{module_forward.1} parent=5 // pred_check
        %p3176 = pneg %p3175
      $region42: #{module_forward.1} parent=5 // pred_check_branch
        %3178 = sbr.rel (%p3176) target = $region44
      $region43: #{module_forward.1} parent=5 // pred_region
        %s3179 = ssub.s32 %s12, 2
        // Predicated region
        $region45: #{module_forward.1} parent=43 // pred_check
          %p3180 = pneg %p109
        $region46: #{module_forward.1} parent=43 // pred_check_branch
          %3182 = sbr.rel (%p3180) target = $region48
        $region47: #{module_forward.1} parent=43 // pred_region
          %s3183 = smul.u32 144, %s18
          %p3184 = scmp.lt.s32.totalorder %s3183, 287
          %s3185 = scalar_select %p3184, %s3183, 287
          %s3186 = smul.addr %s3185, 8
          %s3187 = scalar_lea.vmem %s3, %s3186
        $region48: #{module_forward.1} parent=43 // pred_fallthru
          _
      $region44: #{module_forward.1} parent=5 // pred_fallthru
        _
    $region6: #{module_forward.1} parent=1 // loop_footer
      %s16 = sadd.s32 1, %s12
    $region7: #{module_forward.1} parent=1 // loop_footer_branch
      %11 = sbr.rel target = $region3
    $region8: #{module_forward.1} parent=1 // loop_exit
      _
    %3188 = vsyncpa [#allocation3], 1
    %s3189 = scalar_lea.sflag [#allocation3], 1
    %3190 = vsyncpa %s3189, 1

</llo_original>
